<compile_context>
chip_gen: v5e
topology: v5e:2x2
jax: 0.10.0
libtpu: 0.0.40
codegen_flags: <defaults>
</compile_context>

<pallas_src>
import math
import jax
import jax.numpy as jnp
from jax import lax
from jax.experimental import pallas as pl
from jax.experimental.pallas import tpu as pltpu

# ---- static config ----
N_LAYERS = 2
D_MODEL = 32
N_HEADS = 4
D_FF = 64
SEQ = 8
BATCH = 2
EPS = 1e-6
D_K = D_MODEL // N_HEADS
BS = BATCH * SEQ  # fused (batch*seq) rows processed in one grid step


def _layer_norm(x, a, b):
    # x: (R, D); a, b: (1, D). Unbiased std (matches the annotated-transformer LayerNorm).
    mean = jnp.mean(x, axis=-1, keepdims=True)
    var = jnp.sum((x - mean) ** 2, axis=-1, keepdims=True) * (1.0 / (x.shape[-1] - 1))
    # exact reciprocal here: its error would otherwise feed the residual stream
    inv = pl.reciprocal(jnp.sqrt(var) + EPS, approx=False)
    return a * (x - mean) * inv + b


def encoder_kernel(x_ref, bias_ref,
                   wqkv_ref, bqkv_ref, wo_ref, bo_ref,
                   ln1a_ref, ln1b_ref,
                   w1_ref, b1_ref, w2_ref, b2_ref,
                   ln2a_ref, ln2b_ref,
                   lnfa_ref, lnfb_ref,
                   out_ref):
    x = x_ref[...].astype(jnp.float32)   # (BS, D)  batch fused into sublanes
    bias = bias_ref[...]                 # (BS, BS) hoisted block-diag additive mask bias

    for l in range(N_LAYERS):            # static unroll over layers
        # ---------- self-attention sublayer (pre-norm residual) ----------
        xn = _layer_norm(x, ln1a_ref[l], ln1b_ref[l])
        # fused QKV projection: one MXU matmul (1/sqrt(d_k) already folded into Q cols)
        qkv = jnp.dot(xn, wqkv_ref[l], preferred_element_type=jnp.float32) + bqkv_ref[l]

        heads = []
        for h in range(N_HEADS):          # static unroll over heads
            qh = qkv[:, h * D_K:(h + 1) * D_K]
            kh = qkv[:, D_MODEL + h * D_K: D_MODEL + (h + 1) * D_K]
            vh = qkv[:, 2 * D_MODEL + h * D_K: 2 * D_MODEL + (h + 1) * D_K]
            # q @ k^T without an explicit transpose: contract dim 1 of both operands
            s = lax.dot_general(qh, kh, (((1,), (1,)), ((), ())),
                                preferred_element_type=jnp.float32) + bias
            # max-subtraction dropped: scores are bounded (LayerNorm'd activations,
            # small weights) and masked entries underflow exp(-1e9) -> 0.0
            p = jnp.exp(s)
            p = p * pl.reciprocal(jnp.sum(p, axis=-1, keepdims=True), approx=True)
            heads.append(jnp.dot(p, vh, preferred_element_type=jnp.float32))
        # assemble a lane-contiguous (BS, D_MODEL) slab, then a single W_O matmul
        attn = jnp.concatenate(heads, axis=-1)
        # TODO(synk): dropout omitted (eval-mode identity)
        x = x + jnp.dot(attn, wo_ref[l], preferred_element_type=jnp.float32) + bo_ref[l]

        # ---------- position-wise feed-forward sublayer ----------
        xn = _layer_norm(x, ln2a_ref[l], ln2b_ref[l])
        h1 = jnp.maximum(
            jnp.dot(xn, w1_ref[l], preferred_element_type=jnp.float32) + b1_ref[l], 0.0)
        x = x + jnp.dot(h1, w2_ref[l], preferred_element_type=jnp.float32) + b2_ref[l]

    # ---------- final encoder LayerNorm ----------
    out_ref[...] = _layer_norm(x, lnfa_ref[0], lnfb_ref[0]).astype(out_ref.dtype)


def encoder_forward(x, mask, params):
    B, S, D = x.shape
    x_flat = x.reshape(B * S, D)

    # Hoisted additive attention bias over the fused (B*S) axis:
    # block-diagonal (cross-batch pairs masked) combined with the padding mask.
    # NOTE: assumes every query row has >=1 valid key in its own batch block.
    # Scaling guard: this is O((B*S)^2) f32 -- switch to per-batch (S,S) masks and a
    # row-tiled grid before B*S grows (first to OOM on v7x's 64 MiB VMEM).
    keep = (mask != 0.0).astype(jnp.float32)                              # (B, S, S)
    eye = jnp.eye(B, dtype=jnp.float32)
    keep_full = jnp.einsum('bqk,bc->bqck', keep, eye).reshape(B * S, B * S)
    bias = jnp.where(keep_full > 0.0, 0.0, -1e9).astype(jnp.float32)      # (BS, BS)

    def full(shape):
        n = len(shape)
        return pl.BlockSpec(shape, lambda i: (0,) * n)

    in_specs = [
        full((B * S, D)),                                      # x (batch fused)
        full((B * S, B * S)),                                  # attention bias
        full((N_LAYERS, D, 3 * D)), full((N_LAYERS, 1, 3 * D)),  # fused Wqkv, bqkv
        full((N_LAYERS, D, D)), full((N_LAYERS, 1, D)),        # wo, bo
        full((N_LAYERS, 1, D)), full((N_LAYERS, 1, D)),        # ln1 a, b
        full((N_LAYERS, D, D_FF)), full((N_LAYERS, 1, D_FF)),  # w1, b1
        full((N_LAYERS, D_FF, D)), full((N_LAYERS, 1, D)),     # w2, b2
        full((N_LAYERS, 1, D)), full((N_LAYERS, 1, D)),        # ln2 a, b
        full((1, 1, D)), full((1, 1, D)),                      # final ln a, b
    ]

    # advisory cost estimate so XLA schedules surrounding HLO around this call
    flops = N_LAYERS * (
        2 * (B * S) * D * (3 * D)                       # fused QKV projection
        + N_HEADS * 2 * 2 * (B * S) * (B * S) * D_K     # scores + PV per head
        + 2 * (B * S) * D * D                           # output projection
        + 2 * 2 * (B * S) * D * D_FF                    # FFN up + down
    )
    transcendentals = N_LAYERS * N_HEADS * (B * S) * (B * S) + (2 * N_LAYERS + 1) * (B * S)
    bytes_accessed = 4 * (x_flat.size + bias.size + sum(int(p.size) for p in params)
                          + B * S * D)

    out_flat = pl.pallas_call(
        encoder_kernel,
        out_shape=jax.ShapeDtypeStruct((B * S, D), jnp.float32),
        grid_spec=pltpu.PrefetchScalarGridSpec(
            num_scalar_prefetch=0,
            grid=(1,),                 # whole (tiny) problem in a single grid step
            in_specs=in_specs,
            out_specs=full((B * S, D)),
        ),
        compiler_params=pltpu.CompilerParams(dimension_semantics=("arbitrary",)),
        cost_estimate=pl.CostEstimate(flops=flops, transcendentals=transcendentals,
                                      bytes_accessed=bytes_accessed),
    )(x_flat, bias, *params)
    return out_flat.reshape(B, S, D)


def init_params(key):
    # Raw ("mathematical") parameters, matching the PyTorch module's weights.
    ks = jax.random.split(key, 8)
    sc = 0.05
    wq = sc * jax.random.normal(ks[0], (N_LAYERS, D_MODEL, D_MODEL), jnp.float32)
    wk = sc * jax.random.normal(ks[1], (N_LAYERS, D_MODEL, D_MODEL), jnp.float32)
    wv = sc * jax.random.normal(ks[2], (N_LAYERS, D_MODEL, D_MODEL), jnp.float32)
    wo = sc * jax.random.normal(ks[3], (N_LAYERS, D_MODEL, D_MODEL), jnp.float32)
    bq = sc * jax.random.normal(ks[4], (N_LAYERS, 1, D_MODEL), jnp.float32)
    bk = jnp.zeros((N_LAYERS, 1, D_MODEL), jnp.float32)
    bv = jnp.zeros((N_LAYERS, 1, D_MODEL), jnp.float32)
    bo = jnp.zeros((N_LAYERS, 1, D_MODEL), jnp.float32)
    wqkv = jnp.concatenate([wq, wk, wv], axis=-1)   # (L, D, 3D) fused QKV weight
    bqkv = jnp.concatenate([bq, bk, bv], axis=-1)   # (L, 1, 3D)
    ln1a = jnp.ones((N_LAYERS, 1, D_MODEL), jnp.float32)
    ln1b = jnp.zeros((N_LAYERS, 1, D_MODEL), jnp.float32)
    w1 = sc * jax.random.normal(ks[5], (N_LAYERS, D_MODEL, D_FF), jnp.float32)
    b1 = jnp.zeros((N_LAYERS, 1, D_FF), jnp.float32)
    w2 = sc * jax.random.normal(ks[6], (N_LAYERS, D_FF, D_MODEL), jnp.float32)
    b2 = jnp.zeros((N_LAYERS, 1, D_MODEL), jnp.float32)
    ln2a = jnp.ones((N_LAYERS, 1, D_MODEL), jnp.float32)
    ln2b = jnp.zeros((N_LAYERS, 1, D_MODEL), jnp.float32)
    lnfa = jnp.ones((1, 1, D_MODEL), jnp.float32)
    lnfb = jnp.zeros((1, 1, D_MODEL), jnp.float32)
    return (wqkv, bqkv, wo, bo, ln1a, ln1b,
            w1, b1, w2, b2, ln2a, ln2b, lnfa, lnfb)


def fold_attention_scale(params):
    # One-time (parameter-construction-time) fold of 1/sqrt(d_k) into the Q columns of
    # the fused QKV weight AND bias (bias must be scaled too, or Q bias is mis-scaled).
    (wqkv, bqkv, *rest) = params
    scale = 1.0 / math.sqrt(D_K)
    col_scale = jnp.concatenate(
        [jnp.full((D_MODEL,), scale, jnp.float32),
         jnp.ones((2 * D_MODEL,), jnp.float32)], axis=0)
    wqkv = wqkv * col_scale[None, None, :]
    bqkv = bqkv * col_scale[None, None, :]
    return (wqkv, bqkv, *rest)


def encoder_reference(x, mask, params):
    # Pure-JAX reference (per-batch, non-fused, RAW unscaled params) for validation.
    (wqkv, bqkv, wo, bo, ln1a, ln1b,
     w1, b1, w2, b2, ln2a, ln2b, lnfa, lnfb) = params

    def ln(y, a, b):
        mean = jnp.mean(y, axis=-1, keepdims=True)
        var = jnp.sum((y - mean) ** 2, axis=-1, keepdims=True) / (y.shape[-1] - 1)
        return a * (y - mean) / (jnp.sqrt(var) + EPS) + b

    outs = []
    for bi in range(x.shape[0]):
        xb = x[bi]
        mb = mask[bi]
        for l in range(N_LAYERS):
            xn = ln(xb, ln1a[l], ln1b[l])
            qkv = xn @ wqkv[l] + bqkv[l]
            q, k, v = qkv[:, :D_MODEL], qkv[:, D_MODEL:2 * D_MODEL], qkv[:, 2 * D_MODEL:]
            heads = []
            for h in range(N_HEADS):
                sl = slice(h * D_K, (h + 1) * D_K)
                s = (q[:, sl] @ k[:, sl].T) / math.sqrt(D_K)
                s = jnp.where(mb == 0.0, -1e9, s)
                p = jax.nn.softmax(s, axis=-1)
                heads.append(p @ v[:, sl])
            attn = jnp.concatenate(heads, axis=-1) @ wo[l] + bo[l]
            xb = xb + attn
            xn = ln(xb, ln2a[l], ln2b[l])
            xb = xb + jnp.maximum(xn @ w1[l] + b1[l], 0.0) @ w2[l] + b2[l]
        outs.append(ln(xb, lnfa[0], lnfb[0]))
    return jnp.stack(outs)


if __name__ == "__main__":
    key = jax.random.PRNGKey(0)
    kx, kp = jax.random.split(key)
    x = jax.random.normal(kx, (BATCH, SEQ, D_MODEL), jnp.float32)

    # padding mask: batch 0 sees all 8 keys, batch 1 only the first 6
    lens = jnp.array([8, 6], jnp.int32)
    key_valid = (jnp.arange(SEQ)[None, :] < lens[:, None]).astype(jnp.float32)  # (B, S)
    mask = jnp.broadcast_to(key_valid[:, None, :], (BATCH, SEQ, SEQ)).astype(jnp.float32)

    params = init_params(kp)                       # raw weights (PyTorch-equivalent)
    kernel_params = fold_attention_scale(params)   # one-time fold of 1/sqrt(d_k)

    out = encoder_forward(x, mask, kernel_params)
    jax.block_until_ready(out)
    assert out.shape == (BATCH, SEQ, D_MODEL)
    assert bool(jnp.all(jnp.isfinite(out)))

    # validate against the pure-JAX reference
    # (tolerance 5e-3: exact LN reciprocal; only the softmax denominator uses the
    #  approx EUP reciprocal)
    ref = encoder_reference(x, mask, params)
    err = float(jnp.max(jnp.abs(out - ref)))
    assert err < 5e-3, f"max |err| = {err}"
    print("KERNEL_OK")
</pallas_src>

<mosaic_0001>
module attributes {stable_mosaic.version = 11 : i64} {
  func.func @encoder_kernel(%arg0: i32, %arg1: memref<16x32xf32, #tpu.memory_space<vmem>>, %arg2: memref<16x16xf32, #tpu.memory_space<vmem>>, %arg3: memref<2x32x96xf32, #tpu.memory_space<vmem>>, %arg4: memref<2x1x96xf32, #tpu.memory_space<vmem>>, %arg5: memref<2x32x32xf32, #tpu.memory_space<vmem>>, %arg6: memref<2x1x32xf32, #tpu.memory_space<vmem>>, %arg7: memref<2x1x32xf32, #tpu.memory_space<vmem>>, %arg8: memref<2x1x32xf32, #tpu.memory_space<vmem>>, %arg9: memref<2x32x64xf32, #tpu.memory_space<vmem>>, %arg10: memref<2x1x64xf32, #tpu.memory_space<vmem>>, %arg11: memref<2x64x32xf32, #tpu.memory_space<vmem>>, %arg12: memref<2x1x32xf32, #tpu.memory_space<vmem>>, %arg13: memref<2x1x32xf32, #tpu.memory_space<vmem>>, %arg14: memref<2x1x32xf32, #tpu.memory_space<vmem>>, %arg15: memref<1x1x32xf32, #tpu.memory_space<vmem>>, %arg16: memref<1x1x32xf32, #tpu.memory_space<vmem>>, %arg17: memref<16x32xf32, #tpu.memory_space<vmem>>) attributes {dimension_semantics = [#tpu.dimension_semantics<arbitrary>], iteration_bounds = array<i64: 1>, scalar_prefetch = 0 : i64, scratch_operands = 0 : i64, tpu.core_type = #tpu.core_type<tc>, window_params = [{pipeline_mode = #tpu.pipeline_mode<synchronous>, transform_indices = @transform_0, window_bounds = array<i64: 16, 32>}, {pipeline_mode = #tpu.pipeline_mode<synchronous>, transform_indices = @transform_1, window_bounds = array<i64: 16, 16>}, {pipeline_mode = #tpu.pipeline_mode<synchronous>, transform_indices = @transform_2, window_bounds = array<i64: 2, 32, 96>}, {pipeline_mode = #tpu.pipeline_mode<synchronous>, transform_indices = @transform_3, window_bounds = array<i64: 2, 1, 96>}, {pipeline_mode = #tpu.pipeline_mode<synchronous>, transform_indices = @transform_4, window_bounds = array<i64: 2, 32, 32>}, {pipeline_mode = #tpu.pipeline_mode<synchronous>, transform_indices = @transform_5, window_bounds = array<i64: 2, 1, 32>}, {pipeline_mode = #tpu.pipeline_mode<synchronous>, transform_indices = @transform_6, window_bounds = array<i64: 2, 1, 32>}, {pipeline_mode = #tpu.pipeline_mode<synchronous>, transform_indices = @transform_7, window_bounds = array<i64: 2, 1, 32>}, {pipeline_mode = #tpu.pipeline_mode<synchronous>, transform_indices = @transform_8, window_bounds = array<i64: 2, 32, 64>}, {pipeline_mode = #tpu.pipeline_mode<synchronous>, transform_indices = @transform_9, window_bounds = array<i64: 2, 1, 64>}, {pipeline_mode = #tpu.pipeline_mode<synchronous>, transform_indices = @transform_10, window_bounds = array<i64: 2, 64, 32>}, {pipeline_mode = #tpu.pipeline_mode<synchronous>, transform_indices = @transform_11, window_bounds = array<i64: 2, 1, 32>}, {pipeline_mode = #tpu.pipeline_mode<synchronous>, transform_indices = @transform_12, window_bounds = array<i64: 2, 1, 32>}, {pipeline_mode = #tpu.pipeline_mode<synchronous>, transform_indices = @transform_13, window_bounds = array<i64: 2, 1, 32>}, {pipeline_mode = #tpu.pipeline_mode<synchronous>, transform_indices = @transform_14, window_bounds = array<i64: 1, 1, 32>}, {pipeline_mode = #tpu.pipeline_mode<synchronous>, transform_indices = @transform_15, window_bounds = array<i64: 1, 1, 32>}, {pipeline_mode = #tpu.pipeline_mode<synchronous>, transform_indices = @transform_16, window_bounds = array<i64: 16, 32>}]} {
    %c0 = arith.constant 0 : index
    %c0_0 = arith.constant 0 : index
    %0 = vector.load %arg1[%c0, %c0_0] : memref<16x32xf32, #tpu.memory_space<vmem>>, vector<16x32xf32>
    %c0_1 = arith.constant 0 : index
    %c0_2 = arith.constant 0 : index
    %1 = vector.load %arg2[%c0_1, %c0_2] : memref<16x16xf32, #tpu.memory_space<vmem>>, vector<16x16xf32>
    %c0_3 = arith.constant 0 : index
    %c0_4 = arith.constant 0 : index
    %c0_5 = arith.constant 0 : index
    %2 = vector.load %arg7[%c0_3, %c0_4, %c0_5] : memref<2x1x32xf32, #tpu.memory_space<vmem>>, vector<1x1x32xf32>
    %3 = vector.shape_cast %2 : vector<1x1x32xf32> to vector<1x32xf32>
    %c0_6 = arith.constant 0 : index
    %c0_7 = arith.constant 0 : index
    %c0_8 = arith.constant 0 : index
    %4 = vector.load %arg8[%c0_6, %c0_7, %c0_8] : memref<2x1x32xf32, #tpu.memory_space<vmem>>, vector<1x1x32xf32>
    %5 = vector.shape_cast %4 : vector<1x1x32xf32> to vector<1x32xf32>
    %cst = arith.constant dense<0.000000e+00> : vector<16xf32>
    %6 = vector.multi_reduction <add>, %0, %cst [1] : vector<16x32xf32> to vector<16xf32>
    %7 = vector.shape_cast %6 : vector<16xf32> to vector<16x1xf32>
    %cst_9 = arith.constant 3.200000e+01 : f32
    %8 = vector.broadcast %cst_9 : f32 to vector<16x1xf32>
    %9 = arith.divf %7, %8 : vector<16x1xf32>
    %10 = vector.broadcast %9 : vector<16x1xf32> to vector<16x32xf32>
    %11 = arith.subf %0, %10 : vector<16x32xf32>
    %12 = arith.mulf %11, %11 : vector<16x32xf32>
    %cst_10 = arith.constant dense<0.000000e+00> : vector<16xf32>
    %13 = vector.multi_reduction <add>, %12, %cst_10 [1] : vector<16x32xf32> to vector<16xf32>
    %14 = vector.shape_cast %13 : vector<16xf32> to vector<16x1xf32>
    %cst_11 = arith.constant 0.0322580636 : f32
    %15 = vector.broadcast %cst_11 : f32 to vector<16x1xf32>
    %16 = arith.mulf %14, %15 : vector<16x1xf32>
    %17 = math.sqrt %16 : vector<16x1xf32>
    %cst_12 = arith.constant 9.99999997E-7 : f32
    %18 = vector.broadcast %cst_12 : f32 to vector<16x1xf32>
    %19 = arith.addf %17, %18 : vector<16x1xf32>
    %20 = tpu.reciprocal %19 : vector<16x1xf32> -> vector<16x1xf32>
    %21 = vector.broadcast %9 : vector<16x1xf32> to vector<16x32xf32>
    %22 = arith.subf %0, %21 : vector<16x32xf32>
    %23 = vector.broadcast %3 : vector<1x32xf32> to vector<16x32xf32>
    %24 = arith.mulf %23, %22 : vector<16x32xf32>
    %25 = vector.broadcast %20 : vector<16x1xf32> to vector<16x32xf32>
    %26 = arith.mulf %24, %25 : vector<16x32xf32>
    %27 = vector.broadcast %5 : vector<1x32xf32> to vector<16x32xf32>
    %28 = arith.addf %26, %27 : vector<16x32xf32>
    %c0_13 = arith.constant 0 : index
    %c0_14 = arith.constant 0 : index
    %c0_15 = arith.constant 0 : index
    %29 = vector.load %arg3[%c0_13, %c0_14, %c0_15] : memref<2x32x96xf32, #tpu.memory_space<vmem>>, vector<1x32x96xf32>
    %30 = vector.shape_cast %29 : vector<1x32x96xf32> to vector<32x96xf32>
    %cst_16 = arith.constant dense<0.000000e+00> : vector<16x96xf32>
    %31 = tpu.matmul %28, %30, %cst_16 {dimension_numbers = #tpu.dot_dimension_numbers<[1], [0], [0], [1], [0, 0, 1, 1], [], []>} : vector<16x32xf32>, vector<32x96xf32>, vector<16x96xf32> -> vector<16x96xf32>
    %c0_17 = arith.constant 0 : index
    %c0_18 = arith.constant 0 : index
    %c0_19 = arith.constant 0 : index
    %32 = vector.load %arg4[%c0_17, %c0_18, %c0_19] : memref<2x1x96xf32, #tpu.memory_space<vmem>>, vector<1x1x96xf32>
    %33 = vector.shape_cast %32 : vector<1x1x96xf32> to vector<1x96xf32>
    %34 = vector.broadcast %33 : vector<1x96xf32> to vector<16x96xf32>
    %35 = arith.addf %31, %34 : vector<16x96xf32>
    %36 = vector.extract_strided_slice %35 {offsets = [0, 0], sizes = [16, 8], strides = [1, 1]} : vector<16x96xf32> to vector<16x8xf32>
    %37 = vector.extract_strided_slice %35 {offsets = [0, 32], sizes = [16, 8], strides = [1, 1]} : vector<16x96xf32> to vector<16x8xf32>
    %38 = vector.extract_strided_slice %35 {offsets = [0, 64], sizes = [16, 8], strides = [1, 1]} : vector<16x96xf32> to vector<16x8xf32>
    %cst_20 = arith.constant dense<0.000000e+00> : vector<16x16xf32>
    %39 = tpu.matmul %36, %37, %cst_20 {dimension_numbers = #tpu.dot_dimension_numbers<[1], [1], [0], [0], [0, 0, 1, 0], [], []>} : vector<16x8xf32>, vector<16x8xf32>, vector<16x16xf32> -> vector<16x16xf32>
    %40 = arith.addf %39, %1 : vector<16x16xf32>
    %41 = math.exp %40 : vector<16x16xf32>
    %cst_21 = arith.constant dense<0.000000e+00> : vector<16xf32>
    %42 = vector.multi_reduction <add>, %41, %cst_21 [1] : vector<16x16xf32> to vector<16xf32>
    %43 = vector.shape_cast %42 : vector<16xf32> to vector<16x1xf32>
    %44 = tpu.reciprocal %43 {approx = true} : vector<16x1xf32> -> vector<16x1xf32>
    %45 = vector.broadcast %44 : vector<16x1xf32> to vector<16x16xf32>
    %46 = arith.mulf %41, %45 : vector<16x16xf32>
    %cst_22 = arith.constant dense<0.000000e+00> : vector<16x8xf32>
    %47 = tpu.matmul %46, %38, %cst_22 {dimension_numbers = #tpu.dot_dimension_numbers<[1], [0], [0], [1], [0, 0, 1, 1], [], []>} : vector<16x16xf32>, vector<16x8xf32>, vector<16x8xf32> -> vector<16x8xf32>
    %48 = vector.extract_strided_slice %35 {offsets = [0, 8], sizes = [16, 8], strides = [1, 1]} : vector<16x96xf32> to vector<16x8xf32>
    %49 = vector.extract_strided_slice %35 {offsets = [0, 40], sizes = [16, 8], strides = [1, 1]} : vector<16x96xf32> to vector<16x8xf32>
    %50 = vector.extract_strided_slice %35 {offsets = [0, 72], sizes = [16, 8], strides = [1, 1]} : vector<16x96xf32> to vector<16x8xf32>
    %cst_23 = arith.constant dense<0.000000e+00> : vector<16x16xf32>
    %51 = tpu.matmul %48, %49, %cst_23 {dimension_numbers = #tpu.dot_dimension_numbers<[1], [1], [0], [0], [0, 0, 1, 0], [], []>} : vector<16x8xf32>, vector<16x8xf32>, vector<16x16xf32> -> vector<16x16xf32>
    %52 = arith.addf %51, %1 : vector<16x16xf32>
    %53 = math.exp %52 : vector<16x16xf32>
    %cst_24 = arith.constant dense<0.000000e+00> : vector<16xf32>
    %54 = vector.multi_reduction <add>, %53, %cst_24 [1] : vector<16x16xf32> to vector<16xf32>
    %55 = vector.shape_cast %54 : vector<16xf32> to vector<16x1xf32>
    %56 = tpu.reciprocal %55 {approx = true} : vector<16x1xf32> -> vector<16x1xf32>
    %57 = vector.broadcast %56 : vector<16x1xf32> to vector<16x16xf32>
    %58 = arith.mulf %53, %57 : vector<16x16xf32>
    %cst_25 = arith.constant dense<0.000000e+00> : vector<16x8xf32>
    %59 = tpu.matmul %58, %50, %cst_25 {dimension_numbers = #tpu.dot_dimension_numbers<[1], [0], [0], [1], [0, 0, 1, 1], [], []>} : vector<16x16xf32>, vector<16x8xf32>, vector<16x8xf32> -> vector<16x8xf32>
    %60 = vector.extract_strided_slice %35 {offsets = [0, 16], sizes = [16, 8], strides = [1, 1]} : vector<16x96xf32> to vector<16x8xf32>
    %61 = vector.extract_strided_slice %35 {offsets = [0, 48], sizes = [16, 8], strides = [1, 1]} : vector<16x96xf32> to vector<16x8xf32>
    %62 = vector.extract_strided_slice %35 {offsets = [0, 80], sizes = [16, 8], strides = [1, 1]} : vector<16x96xf32> to vector<16x8xf32>
    %cst_26 = arith.constant dense<0.000000e+00> : vector<16x16xf32>
    %63 = tpu.matmul %60, %61, %cst_26 {dimension_numbers = #tpu.dot_dimension_numbers<[1], [1], [0], [0], [0, 0, 1, 0], [], []>} : vector<16x8xf32>, vector<16x8xf32>, vector<16x16xf32> -> vector<16x16xf32>
    %64 = arith.addf %63, %1 : vector<16x16xf32>
    %65 = math.exp %64 : vector<16x16xf32>
    %cst_27 = arith.constant dense<0.000000e+00> : vector<16xf32>
    %66 = vector.multi_reduction <add>, %65, %cst_27 [1] : vector<16x16xf32> to vector<16xf32>
    %67 = vector.shape_cast %66 : vector<16xf32> to vector<16x1xf32>
    %68 = tpu.reciprocal %67 {approx = true} : vector<16x1xf32> -> vector<16x1xf32>
    %69 = vector.broadcast %68 : vector<16x1xf32> to vector<16x16xf32>
    %70 = arith.mulf %65, %69 : vector<16x16xf32>
    %cst_28 = arith.constant dense<0.000000e+00> : vector<16x8xf32>
    %71 = tpu.matmul %70, %62, %cst_28 {dimension_numbers = #tpu.dot_dimension_numbers<[1], [0], [0], [1], [0, 0, 1, 1], [], []>} : vector<16x16xf32>, vector<16x8xf32>, vector<16x8xf32> -> vector<16x8xf32>
    %72 = vector.extract_strided_slice %35 {offsets = [0, 24], sizes = [16, 8], strides = [1, 1]} : vector<16x96xf32> to vector<16x8xf32>
    %73 = vector.extract_strided_slice %35 {offsets = [0, 56], sizes = [16, 8], strides = [1, 1]} : vector<16x96xf32> to vector<16x8xf32>
    %74 = vector.extract_strided_slice %35 {offsets = [0, 88], sizes = [16, 8], strides = [1, 1]} : vector<16x96xf32> to vector<16x8xf32>
    %cst_29 = arith.constant dense<0.000000e+00> : vector<16x16xf32>
    %75 = tpu.matmul %72, %73, %cst_29 {dimension_numbers = #tpu.dot_dimension_numbers<[1], [1], [0], [0], [0, 0, 1, 0], [], []>} : vector<16x8xf32>, vector<16x8xf32>, vector<16x16xf32> -> vector<16x16xf32>
    %76 = arith.addf %75, %1 : vector<16x16xf32>
    %77 = math.exp %76 : vector<16x16xf32>
    %cst_30 = arith.constant dense<0.000000e+00> : vector<16xf32>
    %78 = vector.multi_reduction <add>, %77, %cst_30 [1] : vector<16x16xf32> to vector<16xf32>
    %79 = vector.shape_cast %78 : vector<16xf32> to vector<16x1xf32>
    %80 = tpu.reciprocal %79 {approx = true} : vector<16x1xf32> -> vector<16x1xf32>
    %81 = vector.broadcast %80 : vector<16x1xf32> to vector<16x16xf32>
    %82 = arith.mulf %77, %81 : vector<16x16xf32>
    %cst_31 = arith.constant dense<0.000000e+00> : vector<16x8xf32>
    %83 = tpu.matmul %82, %74, %cst_31 {dimension_numbers = #tpu.dot_dimension_numbers<[1], [0], [0], [1], [0, 0, 1, 1], [], []>} : vector<16x16xf32>, vector<16x8xf32>, vector<16x8xf32> -> vector<16x8xf32>
    %84 = tpu.concatenate %47, %59, %71, %83 in 1 : vector<16x8xf32>, vector<16x8xf32>, vector<16x8xf32>, vector<16x8xf32> -> vector<16x32xf32>
    %c0_32 = arith.constant 0 : index
    %c0_33 = arith.constant 0 : index
    %c0_34 = arith.constant 0 : index
    %85 = vector.load %arg5[%c0_32, %c0_33, %c0_34] : memref<2x32x32xf32, #tpu.memory_space<vmem>>, vector<1x32x32xf32>
    %86 = vector.shape_cast %85 : vector<1x32x32xf32> to vector<32x32xf32>
    %cst_35 = arith.constant dense<0.000000e+00> : vector<16x32xf32>
    %87 = tpu.matmul %84, %86, %cst_35 {dimension_numbers = #tpu.dot_dimension_numbers<[1], [0], [0], [1], [0, 0, 1, 1], [], []>} : vector<16x32xf32>, vector<32x32xf32>, vector<16x32xf32> -> vector<16x32xf32>
    %88 = arith.addf %0, %87 : vector<16x32xf32>
    %c0_36 = arith.constant 0 : index
    %c0_37 = arith.constant 0 : index
    %c0_38 = arith.constant 0 : index
    %89 = vector.load %arg6[%c0_36, %c0_37, %c0_38] : memref<2x1x32xf32, #tpu.memory_space<vmem>>, vector<1x1x32xf32>
    %90 = vector.shape_cast %89 : vector<1x1x32xf32> to vector<1x32xf32>
    %91 = vector.broadcast %90 : vector<1x32xf32> to vector<16x32xf32>
    %92 = arith.addf %88, %91 : vector<16x32xf32>
    %c0_39 = arith.constant 0 : index
    %c0_40 = arith.constant 0 : index
    %c0_41 = arith.constant 0 : index
    %93 = vector.load %arg13[%c0_39, %c0_40, %c0_41] : memref<2x1x32xf32, #tpu.memory_space<vmem>>, vector<1x1x32xf32>
    %94 = vector.shape_cast %93 : vector<1x1x32xf32> to vector<1x32xf32>
    %c0_42 = arith.constant 0 : index
    %c0_43 = arith.constant 0 : index
    %c0_44 = arith.constant 0 : index
    %95 = vector.load %arg14[%c0_42, %c0_43, %c0_44] : memref<2x1x32xf32, #tpu.memory_space<vmem>>, vector<1x1x32xf32>
    %96 = vector.shape_cast %95 : vector<1x1x32xf32> to vector<1x32xf32>
    %cst_45 = arith.constant dense<0.000000e+00> : vector<16xf32>
    %97 = vector.multi_reduction <add>, %92, %cst_45 [1] : vector<16x32xf32> to vector<16xf32>
    %98 = vector.shape_cast %97 : vector<16xf32> to vector<16x1xf32>
    %cst_46 = arith.constant 3.200000e+01 : f32
    %99 = vector.broadcast %cst_46 : f32 to vector<16x1xf32>
    %100 = arith.divf %98, %99 : vector<16x1xf32>
    %101 = vector.broadcast %100 : vector<16x1xf32> to vector<16x32xf32>
    %102 = arith.subf %92, %101 : vector<16x32xf32>
    %103 = arith.mulf %102, %102 : vector<16x32xf32>
    %cst_47 = arith.constant dense<0.000000e+00> : vector<16xf32>
    %104 = vector.multi_reduction <add>, %103, %cst_47 [1] : vector<16x32xf32> to vector<16xf32>
    %105 = vector.shape_cast %104 : vector<16xf32> to vector<16x1xf32>
    %cst_48 = arith.constant 0.0322580636 : f32
    %106 = vector.broadcast %cst_48 : f32 to vector<16x1xf32>
    %107 = arith.mulf %105, %106 : vector<16x1xf32>
    %108 = math.sqrt %107 : vector<16x1xf32>
    %cst_49 = arith.constant 9.99999997E-7 : f32
    %109 = vector.broadcast %cst_49 : f32 to vector<16x1xf32>
    %110 = arith.addf %108, %109 : vector<16x1xf32>
    %111 = tpu.reciprocal %110 : vector<16x1xf32> -> vector<16x1xf32>
    %112 = vector.broadcast %100 : vector<16x1xf32> to vector<16x32xf32>
    %113 = arith.subf %92, %112 : vector<16x32xf32>
    %114 = vector.broadcast %94 : vector<1x32xf32> to vector<16x32xf32>
    %115 = arith.mulf %114, %113 : vector<16x32xf32>
    %116 = vector.broadcast %111 : vector<16x1xf32> to vector<16x32xf32>
    %117 = arith.mulf %115, %116 : vector<16x32xf32>
    %118 = vector.broadcast %96 : vector<1x32xf32> to vector<16x32xf32>
    %119 = arith.addf %117, %118 : vector<16x32xf32>
    %c0_50 = arith.constant 0 : index
    %c0_51 = arith.constant 0 : index
    %c0_52 = arith.constant 0 : index
    %120 = vector.load %arg9[%c0_50, %c0_51, %c0_52] : memref<2x32x64xf32, #tpu.memory_space<vmem>>, vector<1x32x64xf32>
    %121 = vector.shape_cast %120 : vector<1x32x64xf32> to vector<32x64xf32>
    %cst_53 = arith.constant dense<0.000000e+00> : vector<16x64xf32>
    %122 = tpu.matmul %119, %121, %cst_53 {dimension_numbers = #tpu.dot_dimension_numbers<[1], [0], [0], [1], [0, 0, 1, 1], [], []>} : vector<16x32xf32>, vector<32x64xf32>, vector<16x64xf32> -> vector<16x64xf32>
    %c0_54 = arith.constant 0 : index
    %c0_55 = arith.constant 0 : index
    %c0_56 = arith.constant 0 : index
    %123 = vector.load %arg10[%c0_54, %c0_55, %c0_56] : memref<2x1x64xf32, #tpu.memory_space<vmem>>, vector<1x1x64xf32>
    %124 = vector.shape_cast %123 : vector<1x1x64xf32> to vector<1x64xf32>
    %125 = vector.broadcast %124 : vector<1x64xf32> to vector<16x64xf32>
    %126 = arith.addf %122, %125 : vector<16x64xf32>
    %cst_57 = arith.constant 0.000000e+00 : f32
    %127 = vector.broadcast %cst_57 : f32 to vector<16x64xf32>
    %128 = arith.maximumf %126, %127 : vector<16x64xf32>
    %c0_58 = arith.constant 0 : index
    %c0_59 = arith.constant 0 : index
    %c0_60 = arith.constant 0 : index
    %129 = vector.load %arg11[%c0_58, %c0_59, %c0_60] : memref<2x64x32xf32, #tpu.memory_space<vmem>>, vector<1x64x32xf32>
    %130 = vector.shape_cast %129 : vector<1x64x32xf32> to vector<64x32xf32>
    %cst_61 = arith.constant dense<0.000000e+00> : vector<16x32xf32>
    %131 = tpu.matmul %128, %130, %cst_61 {dimension_numbers = #tpu.dot_dimension_numbers<[1], [0], [0], [1], [0, 0, 1, 1], [], []>} : vector<16x64xf32>, vector<64x32xf32>, vector<16x32xf32> -> vector<16x32xf32>
    %132 = arith.addf %92, %131 : vector<16x32xf32>
    %c0_62 = arith.constant 0 : index
    %c0_63 = arith.constant 0 : index
    %c0_64 = arith.constant 0 : index
    %133 = vector.load %arg12[%c0_62, %c0_63, %c0_64] : memref<2x1x32xf32, #tpu.memory_space<vmem>>, vector<1x1x32xf32>
    %134 = vector.shape_cast %133 : vector<1x1x32xf32> to vector<1x32xf32>
    %135 = vector.broadcast %134 : vector<1x32xf32> to vector<16x32xf32>
    %136 = arith.addf %132, %135 : vector<16x32xf32>
    %c1 = arith.constant 1 : index
    %c0_65 = arith.constant 0 : index
    %c0_66 = arith.constant 0 : index
    %137 = vector.load %arg7[%c1, %c0_65, %c0_66] : memref<2x1x32xf32, #tpu.memory_space<vmem>>, vector<1x1x32xf32>
    %138 = vector.shape_cast %137 : vector<1x1x32xf32> to vector<1x32xf32>
    %c1_67 = arith.constant 1 : index
    %c0_68 = arith.constant 0 : index
    %c0_69 = arith.constant 0 : index
    %139 = vector.load %arg8[%c1_67, %c0_68, %c0_69] : memref<2x1x32xf32, #tpu.memory_space<vmem>>, vector<1x1x32xf32>
    %140 = vector.shape_cast %139 : vector<1x1x32xf32> to vector<1x32xf32>
    %cst_70 = arith.constant dense<0.000000e+00> : vector<16xf32>
    %141 = vector.multi_reduction <add>, %136, %cst_70 [1] : vector<16x32xf32> to vector<16xf32>
    %142 = vector.shape_cast %141 : vector<16xf32> to vector<16x1xf32>
    %cst_71 = arith.constant 3.200000e+01 : f32
    %143 = vector.broadcast %cst_71 : f32 to vector<16x1xf32>
    %144 = arith.divf %142, %143 : vector<16x1xf32>
    %145 = vector.broadcast %144 : vector<16x1xf32> to vector<16x32xf32>
    %146 = arith.subf %136, %145 : vector<16x32xf32>
    %147 = arith.mulf %146, %146 : vector<16x32xf32>
    %cst_72 = arith.constant dense<0.000000e+00> : vector<16xf32>
    %148 = vector.multi_reduction <add>, %147, %cst_72 [1] : vector<16x32xf32> to vector<16xf32>
    %149 = vector.shape_cast %148 : vector<16xf32> to vector<16x1xf32>
    %cst_73 = arith.constant 0.0322580636 : f32
    %150 = vector.broadcast %cst_73 : f32 to vector<16x1xf32>
    %151 = arith.mulf %149, %150 : vector<16x1xf32>
    %152 = math.sqrt %151 : vector<16x1xf32>
    %cst_74 = arith.constant 9.99999997E-7 : f32
    %153 = vector.broadcast %cst_74 : f32 to vector<16x1xf32>
    %154 = arith.addf %152, %153 : vector<16x1xf32>
    %155 = tpu.reciprocal %154 : vector<16x1xf32> -> vector<16x1xf32>
    %156 = vector.broadcast %144 : vector<16x1xf32> to vector<16x32xf32>
    %157 = arith.subf %136, %156 : vector<16x32xf32>
    %158 = vector.broadcast %138 : vector<1x32xf32> to vector<16x32xf32>
    %159 = arith.mulf %158, %157 : vector<16x32xf32>
    %160 = vector.broadcast %155 : vector<16x1xf32> to vector<16x32xf32>
    %161 = arith.mulf %159, %160 : vector<16x32xf32>
    %162 = vector.broadcast %140 : vector<1x32xf32> to vector<16x32xf32>
    %163 = arith.addf %161, %162 : vector<16x32xf32>
    %c1_75 = arith.constant 1 : index
    %c0_76 = arith.constant 0 : index
    %c0_77 = arith.constant 0 : index
    %164 = vector.load %arg3[%c1_75, %c0_76, %c0_77] : memref<2x32x96xf32, #tpu.memory_space<vmem>>, vector<1x32x96xf32>
    %165 = vector.shape_cast %164 : vector<1x32x96xf32> to vector<32x96xf32>
    %cst_78 = arith.constant dense<0.000000e+00> : vector<16x96xf32>
    %166 = tpu.matmul %163, %165, %cst_78 {dimension_numbers = #tpu.dot_dimension_numbers<[1], [0], [0], [1], [0, 0, 1, 1], [], []>} : vector<16x32xf32>, vector<32x96xf32>, vector<16x96xf32> -> vector<16x96xf32>
    %c1_79 = arith.constant 1 : index
    %c0_80 = arith.constant 0 : index
    %c0_81 = arith.constant 0 : index
    %167 = vector.load %arg4[%c1_79, %c0_80, %c0_81] : memref<2x1x96xf32, #tpu.memory_space<vmem>>, vector<1x1x96xf32>
    %168 = vector.shape_cast %167 : vector<1x1x96xf32> to vector<1x96xf32>
    %169 = vector.broadcast %168 : vector<1x96xf32> to vector<16x96xf32>
    %170 = arith.addf %166, %169 : vector<16x96xf32>
    %171 = vector.extract_strided_slice %170 {offsets = [0, 0], sizes = [16, 8], strides = [1, 1]} : vector<16x96xf32> to vector<16x8xf32>
    %172 = vector.extract_strided_slice %170 {offsets = [0, 32], sizes = [16, 8], strides = [1, 1]} : vector<16x96xf32> to vector<16x8xf32>
    %173 = vector.extract_strided_slice %170 {offsets = [0, 64], sizes = [16, 8], strides = [1, 1]} : vector<16x96xf32> to vector<16x8xf32>
    %cst_82 = arith.constant dense<0.000000e+00> : vector<16x16xf32>
    %174 = tpu.matmul %171, %172, %cst_82 {dimension_numbers = #tpu.dot_dimension_numbers<[1], [1], [0], [0], [0, 0, 1, 0], [], []>} : vector<16x8xf32>, vector<16x8xf32>, vector<16x16xf32> -> vector<16x16xf32>
    %175 = arith.addf %174, %1 : vector<16x16xf32>
    %176 = math.exp %175 : vector<16x16xf32>
    %cst_83 = arith.constant dense<0.000000e+00> : vector<16xf32>
    %177 = vector.multi_reduction <add>, %176, %cst_83 [1] : vector<16x16xf32> to vector<16xf32>
    %178 = vector.shape_cast %177 : vector<16xf32> to vector<16x1xf32>
    %179 = tpu.reciprocal %178 {approx = true} : vector<16x1xf32> -> vector<16x1xf32>
    %180 = vector.broadcast %179 : vector<16x1xf32> to vector<16x16xf32>
    %181 = arith.mulf %176, %180 : vector<16x16xf32>
    %cst_84 = arith.constant dense<0.000000e+00> : vector<16x8xf32>
    %182 = tpu.matmul %181, %173, %cst_84 {dimension_numbers = #tpu.dot_dimension_numbers<[1], [0], [0], [1], [0, 0, 1, 1], [], []>} : vector<16x16xf32>, vector<16x8xf32>, vector<16x8xf32> -> vector<16x8xf32>
    %183 = vector.extract_strided_slice %170 {offsets = [0, 8], sizes = [16, 8], strides = [1, 1]} : vector<16x96xf32> to vector<16x8xf32>
    %184 = vector.extract_strided_slice %170 {offsets = [0, 40], sizes = [16, 8], strides = [1, 1]} : vector<16x96xf32> to vector<16x8xf32>
    %185 = vector.extract_strided_slice %170 {offsets = [0, 72], sizes = [16, 8], strides = [1, 1]} : vector<16x96xf32> to vector<16x8xf32>
    %cst_85 = arith.constant dense<0.000000e+00> : vector<16x16xf32>
    %186 = tpu.matmul %183, %184, %cst_85 {dimension_numbers = #tpu.dot_dimension_numbers<[1], [1], [0], [0], [0, 0, 1, 0], [], []>} : vector<16x8xf32>, vector<16x8xf32>, vector<16x16xf32> -> vector<16x16xf32>
    %187 = arith.addf %186, %1 : vector<16x16xf32>
    %188 = math.exp %187 : vector<16x16xf32>
    %cst_86 = arith.constant dense<0.000000e+00> : vector<16xf32>
    %189 = vector.multi_reduction <add>, %188, %cst_86 [1] : vector<16x16xf32> to vector<16xf32>
    %190 = vector.shape_cast %189 : vector<16xf32> to vector<16x1xf32>
    %191 = tpu.reciprocal %190 {approx = true} : vector<16x1xf32> -> vector<16x1xf32>
    %192 = vector.broadcast %191 : vector<16x1xf32> to vector<16x16xf32>
    %193 = arith.mulf %188, %192 : vector<16x16xf32>
    %cst_87 = arith.constant dense<0.000000e+00> : vector<16x8xf32>
    %194 = tpu.matmul %193, %185, %cst_87 {dimension_numbers = #tpu.dot_dimension_numbers<[1], [0], [0], [1], [0, 0, 1, 1], [], []>} : vector<16x16xf32>, vector<16x8xf32>, vector<16x8xf32> -> vector<16x8xf32>
    %195 = vector.extract_strided_slice %170 {offsets = [0, 16], sizes = [16, 8], strides = [1, 1]} : vector<16x96xf32> to vector<16x8xf32>
    %196 = vector.extract_strided_slice %170 {offsets = [0, 48], sizes = [16, 8], strides = [1, 1]} : vector<16x96xf32> to vector<16x8xf32>
    %197 = vector.extract_strided_slice %170 {offsets = [0, 80], sizes = [16, 8], strides = [1, 1]} : vector<16x96xf32> to vector<16x8xf32>
    %cst_88 = arith.constant dense<0.000000e+00> : vector<16x16xf32>
    %198 = tpu.matmul %195, %196, %cst_88 {dimension_numbers = #tpu.dot_dimension_numbers<[1], [1], [0], [0], [0, 0, 1, 0], [], []>} : vector<16x8xf32>, vector<16x8xf32>, vector<16x16xf32> -> vector<16x16xf32>
    %199 = arith.addf %198, %1 : vector<16x16xf32>
    %200 = math.exp %199 : vector<16x16xf32>
    %cst_89 = arith.constant dense<0.000000e+00> : vector<16xf32>
    %201 = vector.multi_reduction <add>, %200, %cst_89 [1] : vector<16x16xf32> to vector<16xf32>
    %202 = vector.shape_cast %201 : vector<16xf32> to vector<16x1xf32>
    %203 = tpu.reciprocal %202 {approx = true} : vector<16x1xf32> -> vector<16x1xf32>
    %204 = vector.broadcast %203 : vector<16x1xf32> to vector<16x16xf32>
    %205 = arith.mulf %200, %204 : vector<16x16xf32>
    %cst_90 = arith.constant dense<0.000000e+00> : vector<16x8xf32>
    %206 = tpu.matmul %205, %197, %cst_90 {dimension_numbers = #tpu.dot_dimension_numbers<[1], [0], [0], [1], [0, 0, 1, 1], [], []>} : vector<16x16xf32>, vector<16x8xf32>, vector<16x8xf32> -> vector<16x8xf32>
    %207 = vector.extract_strided_slice %170 {offsets = [0, 24], sizes = [16, 8], strides = [1, 1]} : vector<16x96xf32> to vector<16x8xf32>
    %208 = vector.extract_strided_slice %170 {offsets = [0, 56], sizes = [16, 8], strides = [1, 1]} : vector<16x96xf32> to vector<16x8xf32>
    %209 = vector.extract_strided_slice %170 {offsets = [0, 88], sizes = [16, 8], strides = [1, 1]} : vector<16x96xf32> to vector<16x8xf32>
    %cst_91 = arith.constant dense<0.000000e+00> : vector<16x16xf32>
    %210 = tpu.matmul %207, %208, %cst_91 {dimension_numbers = #tpu.dot_dimension_numbers<[1], [1], [0], [0], [0, 0, 1, 0], [], []>} : vector<16x8xf32>, vector<16x8xf32>, vector<16x16xf32> -> vector<16x16xf32>
    %211 = arith.addf %210, %1 : vector<16x16xf32>
    %212 = math.exp %211 : vector<16x16xf32>
    %cst_92 = arith.constant dense<0.000000e+00> : vector<16xf32>
    %213 = vector.multi_reduction <add>, %212, %cst_92 [1] : vector<16x16xf32> to vector<16xf32>
    %214 = vector.shape_cast %213 : vector<16xf32> to vector<16x1xf32>
    %215 = tpu.reciprocal %214 {approx = true} : vector<16x1xf32> -> vector<16x1xf32>
    %216 = vector.broadcast %215 : vector<16x1xf32> to vector<16x16xf32>
    %217 = arith.mulf %212, %216 : vector<16x16xf32>
    %cst_93 = arith.constant dense<0.000000e+00> : vector<16x8xf32>
    %218 = tpu.matmul %217, %209, %cst_93 {dimension_numbers = #tpu.dot_dimension_numbers<[1], [0], [0], [1], [0, 0, 1, 1], [], []>} : vector<16x16xf32>, vector<16x8xf32>, vector<16x8xf32> -> vector<16x8xf32>
    %219 = tpu.concatenate %182, %194, %206, %218 in 1 : vector<16x8xf32>, vector<16x8xf32>, vector<16x8xf32>, vector<16x8xf32> -> vector<16x32xf32>
    %c1_94 = arith.constant 1 : index
    %c0_95 = arith.constant 0 : index
    %c0_96 = arith.constant 0 : index
    %220 = vector.load %arg5[%c1_94, %c0_95, %c0_96] : memref<2x32x32xf32, #tpu.memory_space<vmem>>, vector<1x32x32xf32>
    %221 = vector.shape_cast %220 : vector<1x32x32xf32> to vector<32x32xf32>
    %cst_97 = arith.constant dense<0.000000e+00> : vector<16x32xf32>
    %222 = tpu.matmul %219, %221, %cst_97 {dimension_numbers = #tpu.dot_dimension_numbers<[1], [0], [0], [1], [0, 0, 1, 1], [], []>} : vector<16x32xf32>, vector<32x32xf32>, vector<16x32xf32> -> vector<16x32xf32>
    %223 = arith.addf %136, %222 : vector<16x32xf32>
    %c1_98 = arith.constant 1 : index
    %c0_99 = arith.constant 0 : index
    %c0_100 = arith.constant 0 : index
    %224 = vector.load %arg6[%c1_98, %c0_99, %c0_100] : memref<2x1x32xf32, #tpu.memory_space<vmem>>, vector<1x1x32xf32>
    %225 = vector.shape_cast %224 : vector<1x1x32xf32> to vector<1x32xf32>
    %226 = vector.broadcast %225 : vector<1x32xf32> to vector<16x32xf32>
    %227 = arith.addf %223, %226 : vector<16x32xf32>
    %c1_101 = arith.constant 1 : index
    %c0_102 = arith.constant 0 : index
    %c0_103 = arith.constant 0 : index
    %228 = vector.load %arg13[%c1_101, %c0_102, %c0_103] : memref<2x1x32xf32, #tpu.memory_space<vmem>>, vector<1x1x32xf32>
    %229 = vector.shape_cast %228 : vector<1x1x32xf32> to vector<1x32xf32>
    %c1_104 = arith.constant 1 : index
    %c0_105 = arith.constant 0 : index
    %c0_106 = arith.constant 0 : index
    %230 = vector.load %arg14[%c1_104, %c0_105, %c0_106] : memref<2x1x32xf32, #tpu.memory_space<vmem>>, vector<1x1x32xf32>
    %231 = vector.shape_cast %230 : vector<1x1x32xf32> to vector<1x32xf32>
    %cst_107 = arith.constant dense<0.000000e+00> : vector<16xf32>
    %232 = vector.multi_reduction <add>, %227, %cst_107 [1] : vector<16x32xf32> to vector<16xf32>
    %233 = vector.shape_cast %232 : vector<16xf32> to vector<16x1xf32>
    %cst_108 = arith.constant 3.200000e+01 : f32
    %234 = vector.broadcast %cst_108 : f32 to vector<16x1xf32>
    %235 = arith.divf %233, %234 : vector<16x1xf32>
    %236 = vector.broadcast %235 : vector<16x1xf32> to vector<16x32xf32>
    %237 = arith.subf %227, %236 : vector<16x32xf32>
    %238 = arith.mulf %237, %237 : vector<16x32xf32>
    %cst_109 = arith.constant dense<0.000000e+00> : vector<16xf32>
    %239 = vector.multi_reduction <add>, %238, %cst_109 [1] : vector<16x32xf32> to vector<16xf32>
    %240 = vector.shape_cast %239 : vector<16xf32> to vector<16x1xf32>
    %cst_110 = arith.constant 0.0322580636 : f32
    %241 = vector.broadcast %cst_110 : f32 to vector<16x1xf32>
    %242 = arith.mulf %240, %241 : vector<16x1xf32>
    %243 = math.sqrt %242 : vector<16x1xf32>
    %cst_111 = arith.constant 9.99999997E-7 : f32
    %244 = vector.broadcast %cst_111 : f32 to vector<16x1xf32>
    %245 = arith.addf %243, %244 : vector<16x1xf32>
    %246 = tpu.reciprocal %245 : vector<16x1xf32> -> vector<16x1xf32>
    %247 = vector.broadcast %235 : vector<16x1xf32> to vector<16x32xf32>
    %248 = arith.subf %227, %247 : vector<16x32xf32>
    %249 = vector.broadcast %229 : vector<1x32xf32> to vector<16x32xf32>
    %250 = arith.mulf %249, %248 : vector<16x32xf32>
    %251 = vector.broadcast %246 : vector<16x1xf32> to vector<16x32xf32>
    %252 = arith.mulf %250, %251 : vector<16x32xf32>
    %253 = vector.broadcast %231 : vector<1x32xf32> to vector<16x32xf32>
    %254 = arith.addf %252, %253 : vector<16x32xf32>
    %c1_112 = arith.constant 1 : index
    %c0_113 = arith.constant 0 : index
    %c0_114 = arith.constant 0 : index
    %255 = vector.load %arg9[%c1_112, %c0_113, %c0_114] : memref<2x32x64xf32, #tpu.memory_space<vmem>>, vector<1x32x64xf32>
    %256 = vector.shape_cast %255 : vector<1x32x64xf32> to vector<32x64xf32>
    %cst_115 = arith.constant dense<0.000000e+00> : vector<16x64xf32>
    %257 = tpu.matmul %254, %256, %cst_115 {dimension_numbers = #tpu.dot_dimension_numbers<[1], [0], [0], [1], [0, 0, 1, 1], [], []>} : vector<16x32xf32>, vector<32x64xf32>, vector<16x64xf32> -> vector<16x64xf32>
    %c1_116 = arith.constant 1 : index
    %c0_117 = arith.constant 0 : index
    %c0_118 = arith.constant 0 : index
    %258 = vector.load %arg10[%c1_116, %c0_117, %c0_118] : memref<2x1x64xf32, #tpu.memory_space<vmem>>, vector<1x1x64xf32>
    %259 = vector.shape_cast %258 : vector<1x1x64xf32> to vector<1x64xf32>
    %260 = vector.broadcast %259 : vector<1x64xf32> to vector<16x64xf32>
    %261 = arith.addf %257, %260 : vector<16x64xf32>
    %cst_119 = arith.constant 0.000000e+00 : f32
    %262 = vector.broadcast %cst_119 : f32 to vector<16x64xf32>
    %263 = arith.maximumf %261, %262 : vector<16x64xf32>
    %c1_120 = arith.constant 1 : index
    %c0_121 = arith.constant 0 : index
    %c0_122 = arith.constant 0 : index
    %264 = vector.load %arg11[%c1_120, %c0_121, %c0_122] : memref<2x64x32xf32, #tpu.memory_space<vmem>>, vector<1x64x32xf32>
    %265 = vector.shape_cast %264 : vector<1x64x32xf32> to vector<64x32xf32>
    %cst_123 = arith.constant dense<0.000000e+00> : vector<16x32xf32>
    %266 = tpu.matmul %263, %265, %cst_123 {dimension_numbers = #tpu.dot_dimension_numbers<[1], [0], [0], [1], [0, 0, 1, 1], [], []>} : vector<16x64xf32>, vector<64x32xf32>, vector<16x32xf32> -> vector<16x32xf32>
    %267 = arith.addf %227, %266 : vector<16x32xf32>
    %c1_124 = arith.constant 1 : index
    %c0_125 = arith.constant 0 : index
    %c0_126 = arith.constant 0 : index
    %268 = vector.load %arg12[%c1_124, %c0_125, %c0_126] : memref<2x1x32xf32, #tpu.memory_space<vmem>>, vector<1x1x32xf32>
    %269 = vector.shape_cast %268 : vector<1x1x32xf32> to vector<1x32xf32>
    %270 = vector.broadcast %269 : vector<1x32xf32> to vector<16x32xf32>
    %271 = arith.addf %267, %270 : vector<16x32xf32>
    %c0_127 = arith.constant 0 : index
    %c0_128 = arith.constant 0 : index
    %c0_129 = arith.constant 0 : index
    %272 = vector.load %arg15[%c0_127, %c0_128, %c0_129] : memref<1x1x32xf32, #tpu.memory_space<vmem>>, vector<1x1x32xf32>
    %273 = vector.shape_cast %272 : vector<1x1x32xf32> to vector<1x32xf32>
    %c0_130 = arith.constant 0 : index
    %c0_131 = arith.constant 0 : index
    %c0_132 = arith.constant 0 : index
    %274 = vector.load %arg16[%c0_130, %c0_131, %c0_132] : memref<1x1x32xf32, #tpu.memory_space<vmem>>, vector<1x1x32xf32>
    %275 = vector.shape_cast %274 : vector<1x1x32xf32> to vector<1x32xf32>
    %cst_133 = arith.constant dense<0.000000e+00> : vector<16xf32>
    %276 = vector.multi_reduction <add>, %271, %cst_133 [1] : vector<16x32xf32> to vector<16xf32>
    %277 = vector.shape_cast %276 : vector<16xf32> to vector<16x1xf32>
    %cst_134 = arith.constant 3.200000e+01 : f32
    %278 = vector.broadcast %cst_134 : f32 to vector<16x1xf32>
    %279 = arith.divf %277, %278 : vector<16x1xf32>
    %280 = vector.broadcast %279 : vector<16x1xf32> to vector<16x32xf32>
    %281 = arith.subf %271, %280 : vector<16x32xf32>
    %282 = arith.mulf %281, %281 : vector<16x32xf32>
    %cst_135 = arith.constant dense<0.000000e+00> : vector<16xf32>
    %283 = vector.multi_reduction <add>, %282, %cst_135 [1] : vector<16x32xf32> to vector<16xf32>
    %284 = vector.shape_cast %283 : vector<16xf32> to vector<16x1xf32>
    %cst_136 = arith.constant 0.0322580636 : f32
    %285 = vector.broadcast %cst_136 : f32 to vector<16x1xf32>
    %286 = arith.mulf %284, %285 : vector<16x1xf32>
    %287 = math.sqrt %286 : vector<16x1xf32>
    %cst_137 = arith.constant 9.99999997E-7 : f32
    %288 = vector.broadcast %cst_137 : f32 to vector<16x1xf32>
    %289 = arith.addf %287, %288 : vector<16x1xf32>
    %290 = tpu.reciprocal %289 : vector<16x1xf32> -> vector<16x1xf32>
    %291 = vector.broadcast %279 : vector<16x1xf32> to vector<16x32xf32>
    %292 = arith.subf %271, %291 : vector<16x32xf32>
    %293 = vector.broadcast %273 : vector<1x32xf32> to vector<16x32xf32>
    %294 = arith.mulf %293, %292 : vector<16x32xf32>
    %295 = vector.broadcast %290 : vector<16x1xf32> to vector<16x32xf32>
    %296 = arith.mulf %294, %295 : vector<16x32xf32>
    %297 = vector.broadcast %275 : vector<1x32xf32> to vector<16x32xf32>
    %298 = arith.addf %296, %297 : vector<16x32xf32>
    %c0_138 = arith.constant 0 : index
    %c0_139 = arith.constant 0 : index
    %299 = vector.load %arg17[%c0_138, %c0_139] : memref<16x32xf32, #tpu.memory_space<vmem>>, vector<16x32xf32>
    tpu.vector_store %arg17[%c0_138, %c0_139], %298 {strides = array<i32>} : memref<16x32xf32, #tpu.memory_space<vmem>>, vector<16x32xf32>,
    return
  }
  func.func @transform_0(%arg0: i32) -> (i32, i32) {
    %c0_i32 = arith.constant 0 : i32
    %c0_i32_0 = arith.constant 0 : i32
    %c0_i32_1 = arith.constant 0 : i32
    return %c0_i32, %c0_i32_0 : i32, i32
  }
  func.func @transform_1(%arg0: i32) -> (i32, i32) {
    %c0_i32 = arith.constant 0 : i32
    %c0_i32_0 = arith.constant 0 : i32
    %c0_i32_1 = arith.constant 0 : i32
    return %c0_i32, %c0_i32_0 : i32, i32
  }
  func.func @transform_2(%arg0: i32) -> (i32, i32, i32) {
    %c0_i32 = arith.constant 0 : i32
    %c0_i32_0 = arith.constant 0 : i32
    %c0_i32_1 = arith.constant 0 : i32
    %c0_i32_2 = arith.constant 0 : i32
    return %c0_i32, %c0_i32_0, %c0_i32_1 : i32, i32, i32
  }
  func.func @transform_3(%arg0: i32) -> (i32, i32, i32) {
    %c0_i32 = arith.constant 0 : i32
    %c0_i32_0 = arith.constant 0 : i32
    %c0_i32_1 = arith.constant 0 : i32
    %c0_i32_2 = arith.constant 0 : i32
    return %c0_i32, %c0_i32_0, %c0_i32_1 : i32, i32, i32
  }
  func.func @transform_4(%arg0: i32) -> (i32, i32, i32) {
    %c0_i32 = arith.constant 0 : i32
    %c0_i32_0 = arith.constant 0 : i32
    %c0_i32_1 = arith.constant 0 : i32
    %c0_i32_2 = arith.constant 0 : i32
    return %c0_i32, %c0_i32_0, %c0_i32_1 : i32, i32, i32
  }
  func.func @transform_5(%arg0: i32) -> (i32, i32, i32) {
    %c0_i32 = arith.constant 0 : i32
    %c0_i32_0 = arith.constant 0 : i32
    %c0_i32_1 = arith.constant 0 : i32
    %c0_i32_2 = arith.constant 0 : i32
    return %c0_i32, %c0_i32_0, %c0_i32_1 : i32, i32, i32
  }
  func.func @transform_6(%arg0: i32) -> (i32, i32, i32) {
    %c0_i32 = arith.constant 0 : i32
    %c0_i32_0 = arith.constant 0 : i32
    %c0_i32_1 = arith.constant 0 : i32
    %c0_i32_2 = arith.constant 0 : i32
    return %c0_i32, %c0_i32_0, %c0_i32_1 : i32, i32, i32
  }
  func.func @transform_7(%arg0: i32) -> (i32, i32, i32) {
    %c0_i32 = arith.constant 0 : i32
    %c0_i32_0 = arith.constant 0 : i32
    %c0_i32_1 = arith.constant 0 : i32
    %c0_i32_2 = arith.constant 0 : i32
    return %c0_i32, %c0_i32_0, %c0_i32_1 : i32, i32, i32
  }
  func.func @transform_8(%arg0: i32) -> (i32, i32, i32) {
    %c0_i32 = arith.constant 0 : i32
    %c0_i32_0 = arith.constant 0 : i32
    %c0_i32_1 = arith.constant 0 : i32
    %c0_i32_2 = arith.constant 0 : i32
    return %c0_i32, %c0_i32_0, %c0_i32_1 : i32, i32, i32
  }
  func.func @transform_9(%arg0: i32) -> (i32, i32, i32) {
    %c0_i32 = arith.constant 0 : i32
    %c0_i32_0 = arith.constant 0 : i32
    %c0_i32_1 = arith.constant 0 : i32
    %c0_i32_2 = arith.constant 0 : i32
    return %c0_i32, %c0_i32_0, %c0_i32_1 : i32, i32, i32
  }
  func.func @transform_10(%arg0: i32) -> (i32, i32, i32) {
    %c0_i32 = arith.constant 0 : i32
    %c0_i32_0 = arith.constant 0 : i32
    %c0_i32_1 = arith.constant 0 : i32
    %c0_i32_2 = arith.constant 0 : i32
    return %c0_i32, %c0_i32_0, %c0_i32_1 : i32, i32, i32
  }
  func.func @transform_11(%arg0: i32) -> (i32, i32, i32) {
    %c0_i32 = arith.constant 0 : i32
    %c0_i32_0 = arith.constant 0 : i32
    %c0_i32_1 = arith.constant 0 : i32
    %c0_i32_2 = arith.constant 0 : i32
    return %c0_i32, %c0_i32_0, %c0_i32_1 : i32, i32, i32
  }
  func.func @transform_12(%arg0: i32) -> (i32, i32, i32) {
    %c0_i32 = arith.constant 0 : i32
    %c0_i32_0 = arith.constant 0 : i32
    %c0_i32_1 = arith.constant 0 : i32
    %c0_i32_2 = arith.constant 0 : i32
    return %c0_i32, %c0_i32_0, %c0_i32_1 : i32, i32, i32
  }
  func.func @transform_13(%arg0: i32) -> (i32, i32, i32) {
    %c0_i32 = arith.constant 0 : i32
    %c0_i32_0 = arith.constant 0 : i32
    %c0_i32_1 = arith.constant 0 : i32
    %c0_i32_2 = arith.constant 0 : i32
    return %c0_i32, %c0_i32_0, %c0_i32_1 : i32, i32, i32
  }
  func.func @transform_14(%arg0: i32) -> (i32, i32, i32) {
    %c0_i32 = arith.constant 0 : i32
    %c0_i32_0 = arith.constant 0 : i32
    %c0_i32_1 = arith.constant 0 : i32
    %c0_i32_2 = arith.constant 0 : i32
    return %c0_i32, %c0_i32_0, %c0_i32_1 : i32, i32, i32
  }
  func.func @transform_15(%arg0: i32) -> (i32, i32, i32) {
    %c0_i32 = arith.constant 0 : i32
    %c0_i32_0 = arith.constant 0 : i32
    %c0_i32_1 = arith.constant 0 : i32
    %c0_i32_2 = arith.constant 0 : i32
    return %c0_i32, %c0_i32_0, %c0_i32_1 : i32, i32, i32
  }
  func.func @transform_16(%arg0: i32) -> (i32, i32) {
    %c0_i32 = arith.constant 0 : i32
    %c0_i32_0 = arith.constant 0 : i32
    %c0_i32_1 = arith.constant 0 : i32
    return %c0_i32, %c0_i32_0 : i32, i32
  }
}

</mosaic_0001>

<llo_original>
// kernel: tpu_custom_call.1
$region0: #{tpu_custom_call.1}
  #allocation0 [shape = 'u32[]', space=smem, size = 0x4, offset = 0x4, fixed_abs, tag = 'smem constant byte address 0x4 - core index']
  #allocation1 [shape = 'u32[72,128]{1,0:T(1,128)}', space=vmem, size = 0x9000, scoped, tag = 'internal scratch']
  %s0 = inlined_call_operand.hbm [shape: f32[16,32], index: 0, kind: input, shape index: {}]
  %s1 = inlined_call_operand.hbm [shape: f32[16,16], index: 1, kind: input, shape index: {}]
  %s2 = inlined_call_operand.vmem [shape: f32[2,32,96], index: 2, kind: input, shape index: {}]
  %s3 = inlined_call_operand.vmem [shape: f32[2,1,96], index: 3, kind: input, shape index: {}]
  %s4 = inlined_call_operand.vmem [shape: f32[2,32,32], index: 4, kind: input, shape index: {}]
  %s5 = inlined_call_operand.hbm [shape: f32[2,1,32], index: 5, kind: input, shape index: {}]
  %s6 = inlined_call_operand.vmem [shape: f32[2,1,32], index: 6, kind: input, shape index: {}]
  %s7 = inlined_call_operand.hbm [shape: f32[2,1,32], index: 7, kind: input, shape index: {}]
  %s8 = inlined_call_operand.vmem [shape: f32[2,32,64], index: 8, kind: input, shape index: {}]
  %s9 = inlined_call_operand.vmem [shape: f32[2,1,64], index: 9, kind: input, shape index: {}]
  %s10 = inlined_call_operand.vmem [shape: f32[2,64,32], index: 10, kind: input, shape index: {}]
  %s11 = inlined_call_operand.vmem [shape: f32[2,1,32], index: 11, kind: input, shape index: {}]
  %s12 = inlined_call_operand.vmem [shape: f32[2,1,32], index: 12, kind: input, shape index: {}]
  %s13 = inlined_call_operand.hbm [shape: f32[2,1,32], index: 13, kind: input, shape index: {}]
  %s14 = inlined_call_operand.vmem [shape: f32[1,1,32], index: 14, kind: input, shape index: {}]
  %s15 = inlined_call_operand.vmem [shape: f32[1,1,32], index: 15, kind: input, shape index: {}]
  %s16 = inlined_call_operand.hbm [shape: f32[16,32], index: 16, kind: output, shape index: {}]
  %s17 = sld [smem:[#allocation0]]
  $region94: #{tpu_custom_call.1} parent=0
    _
  %s19 = ssub.s32 1, %s17
  %s20 = scalar_select 0, %s19, %s17
  $region1: #{tpu_custom_call.1} parent=0
    #allocation2 [shape = 'u8[8192]{0}', space=vmem, size = 0x2000, scoped, tag = 'input window, operand 0, single buffered']
    #allocation3 [shape = 's32[1]{0}', space=sflag, size = 0x4, scoped, tag = 'scoped memory for tpu_custom_call.1']
    #allocation4 [shape = 's32[1]{0}', space=sflag, size = 0x4, scoped, tag = 'scoped memory for tpu_custom_call.1']
    #allocation5 [shape = 'u8[8192]{0}', space=vmem, size = 0x2000, scoped, tag = 'input window, operand 1, single buffered']
    #allocation6 [shape = 's32[1]{0}', space=sflag, size = 0x4, scoped, tag = 'scoped memory for tpu_custom_call.1']
    #allocation7 [shape = 'u8[1024]{0}', space=vmem, size = 0x400, scoped, tag = 'input window, operand 5, single buffered']
    #allocation8 [shape = 'u8[1024]{0}', space=vmem, size = 0x400, scoped, tag = 'input window, operand 7, single buffered']
    #allocation9 [shape = 's32[1]{0}', space=sflag, size = 0x4, scoped, tag = 'scoped memory for tpu_custom_call.1']
    #allocation10 [shape = 'u8[1024]{0}', space=vmem, size = 0x400, scoped, tag = 'input window, operand 13, single buffered']
    #allocation11 [shape = 'u8[8192]{0}', space=vmem, size = 0x2000, scoped, tag = 'output window, operand 0, single buffered']
    %21 = vsyncpa [#allocation3], 0
    %22 = vsyncpa [#allocation6], 0
    %23 = vsyncpa [#allocation9], 0
    %24 = vsyncpa [#allocation4], 0
    // Predicated region
    $region2: #{tpu_custom_call.1} parent=1 // pred_check
      _
    $region3: #{tpu_custom_call.1} parent=1 // pred_check_branch
      %26 = sbr.rel (0) target = $region5
    $region4: #{tpu_custom_call.1} parent=1 // pred_region
      %28 = vsyncadd [#allocation3], 0
      %s29 = sshll.u32 %s0, 4
      %s30 = int_to_ptr.hbm [resolvable:$true] %s29
      %s31 = sshll.u32 [#allocation2], 4
      %s32 = int_to_ptr.vmem [resolvable:$true] %s31
      %37 = dma.hbm_to_vmem [thread:$0]  %s30, 256, %s32, [#allocation3], 128, 128, 8
    $region5: #{tpu_custom_call.1} parent=1 // pred_fallthru
      _
    // Predicated region
    $region6: #{tpu_custom_call.1} parent=1 // pred_check
      _
    $region7: #{tpu_custom_call.1} parent=1 // pred_check_branch
      %39 = sbr.rel (0) target = $region9
    $region8: #{tpu_custom_call.1} parent=1 // pred_region
      %41 = vsyncadd [#allocation6], 0
      %s42 = sshll.u32 %s1, 4
      %s43 = int_to_ptr.hbm [resolvable:$true] %s42
      %s44 = sshll.u32 [#allocation5], 4
      %s45 = int_to_ptr.vmem [resolvable:$true] %s44
      %50 = dma.hbm_to_vmem [thread:$0]  %s43, 256, %s45, [#allocation6], 128, 128, 8
    $region9: #{tpu_custom_call.1} parent=1 // pred_fallthru
      _
    // Predicated region
    $region10: #{tpu_custom_call.1} parent=1 // pred_check
      _
    $region11: #{tpu_custom_call.1} parent=1 // pred_check_branch
      %52 = sbr.rel (0) target = $region13
    $region12: #{tpu_custom_call.1} parent=1 // pred_region
      _
    $region13: #{tpu_custom_call.1} parent=1 // pred_fallthru
      _
    // Predicated region
    $region14: #{tpu_custom_call.1} parent=1 // pred_check
      _
    $region15: #{tpu_custom_call.1} parent=1 // pred_check_branch
      %54 = sbr.rel (0) target = $region17
    $region16: #{tpu_custom_call.1} parent=1 // pred_region
      _
    $region17: #{tpu_custom_call.1} parent=1 // pred_fallthru
      _
    // Predicated region
    $region18: #{tpu_custom_call.1} parent=1 // pred_check
      _
    $region19: #{tpu_custom_call.1} parent=1 // pred_check_branch
      %56 = sbr.rel (0) target = $region21
    $region20: #{tpu_custom_call.1} parent=1 // pred_region
      _
    $region21: #{tpu_custom_call.1} parent=1 // pred_fallthru
      _
    // Predicated region
    $region22: #{tpu_custom_call.1} parent=1 // pred_check
      _
    $region23: #{tpu_custom_call.1} parent=1 // pred_check_branch
      %58 = sbr.rel (0) target = $region25
    $region24: #{tpu_custom_call.1} parent=1 // pred_region
      %60 = vsyncadd [#allocation6], 0
      %s61 = sshll.u32 %s5, 4
      %s62 = int_to_ptr.hbm [resolvable:$true] %s61
      %s63 = sshll.u32 [#allocation7], 4
      %s64 = int_to_ptr.vmem [resolvable:$true] %s63
      %69 = dma.hbm_to_vmem [thread:$0]  %s62, 32, %s64, [#allocation6], 16, 16, 1
    $region25: #{tpu_custom_call.1} parent=1 // pred_fallthru
      _
    // Predicated region
    $region26: #{tpu_custom_call.1} parent=1 // pred_check
      _
    $region27: #{tpu_custom_call.1} parent=1 // pred_check_branch
      %71 = sbr.rel (0) target = $region29
    $region28: #{tpu_custom_call.1} parent=1 // pred_region
      _
    $region29: #{tpu_custom_call.1} parent=1 // pred_fallthru
      _
    // Predicated region
    $region30: #{tpu_custom_call.1} parent=1 // pred_check
      _
    $region31: #{tpu_custom_call.1} parent=1 // pred_check_branch
      %73 = sbr.rel (0) target = $region33
    $region32: #{tpu_custom_call.1} parent=1 // pred_region
      %75 = vsyncadd [#allocation9], 0
      %s76 = sshll.u32 %s7, 4
      %s77 = int_to_ptr.hbm [resolvable:$true] %s76
      %s78 = sshll.u32 [#allocation8], 4
      %s79 = int_to_ptr.vmem [resolvable:$true] %s78
      %84 = dma.hbm_to_vmem [thread:$0]  %s77, 32, %s79, [#allocation9], 16, 16, 1
    $region33: #{tpu_custom_call.1} parent=1 // pred_fallthru
      _
    // Predicated region
    $region34: #{tpu_custom_call.1} parent=1 // pred_check
      _
    $region35: #{tpu_custom_call.1} parent=1 // pred_check_branch
      %86 = sbr.rel (0) target = $region37
    $region36: #{tpu_custom_call.1} parent=1 // pred_region
      _
    $region37: #{tpu_custom_call.1} parent=1 // pred_fallthru
      _
    // Predicated region
    $region38: #{tpu_custom_call.1} parent=1 // pred_check
      _
    $region39: #{tpu_custom_call.1} parent=1 // pred_check_branch
      %88 = sbr.rel (0) target = $region41
    $region40: #{tpu_custom_call.1} parent=1 // pred_region
      _
    $region41: #{tpu_custom_call.1} parent=1 // pred_fallthru
      _
    // Predicated region
    $region42: #{tpu_custom_call.1} parent=1 // pred_check
      _
    $region43: #{tpu_custom_call.1} parent=1 // pred_check_branch
      %90 = sbr.rel (0) target = $region45
    $region44: #{tpu_custom_call.1} parent=1 // pred_region
      _
    $region45: #{tpu_custom_call.1} parent=1 // pred_fallthru
      _
    // Predicated region
    $region46: #{tpu_custom_call.1} parent=1 // pred_check
      _
    $region47: #{tpu_custom_call.1} parent=1 // pred_check_branch
      %92 = sbr.rel (0) target = $region49
    $region48: #{tpu_custom_call.1} parent=1 // pred_region
      _
    $region49: #{tpu_custom_call.1} parent=1 // pred_fallthru
      _
    // Predicated region
    $region50: #{tpu_custom_call.1} parent=1 // pred_check
      _
    $region51: #{tpu_custom_call.1} parent=1 // pred_check_branch
      %94 = sbr.rel (0) target = $region53
    $region52: #{tpu_custom_call.1} parent=1 // pred_region
      _
    $region53: #{tpu_custom_call.1} parent=1 // pred_fallthru
      _
    // Predicated region
    $region54: #{tpu_custom_call.1} parent=1 // pred_check
      _
    $region55: #{tpu_custom_call.1} parent=1 // pred_check_branch
      %96 = sbr.rel (0) target = $region57
    $region56: #{tpu_custom_call.1} parent=1 // pred_region
      %98 = vsyncadd [#allocation9], 0
      %s99 = sshll.u32 %s13, 4
      %s100 = int_to_ptr.hbm [resolvable:$true] %s99
      %s101 = sshll.u32 [#allocation10], 4
      %s102 = int_to_ptr.vmem [resolvable:$true] %s101
      %107 = dma.hbm_to_vmem [thread:$0]  %s100, 32, %s102, [#allocation9], 16, 16, 1
    $region57: #{tpu_custom_call.1} parent=1 // pred_fallthru
      _
    // Predicated region
    $region58: #{tpu_custom_call.1} parent=1 // pred_check
      _
    $region59: #{tpu_custom_call.1} parent=1 // pred_check_branch
      %109 = sbr.rel (0) target = $region61
    $region60: #{tpu_custom_call.1} parent=1 // pred_region
      _
    $region61: #{tpu_custom_call.1} parent=1 // pred_fallthru
      _
    // Predicated region
    $region62: #{tpu_custom_call.1} parent=1 // pred_check
      _
    $region63: #{tpu_custom_call.1} parent=1 // pred_check_branch
      %111 = sbr.rel (0) target = $region65
    $region64: #{tpu_custom_call.1} parent=1 // pred_region
      _
    $region65: #{tpu_custom_call.1} parent=1 // pred_fallthru
      _
    // Predicated region
    $region66: #{tpu_custom_call.1} parent=1 // pred_check
      _
    $region67: #{tpu_custom_call.1} parent=1 // pred_check_branch
      %113 = sbr.rel (0) target = $region69
    $region68: #{tpu_custom_call.1} parent=1 // pred_region
      %115 = dma.done [#allocation3], 256
    $region69: #{tpu_custom_call.1} parent=1 // pred_fallthru
      _
    // Predicated region
    $region70: #{tpu_custom_call.1} parent=1 // pred_check
      _
    $region71: #{tpu_custom_call.1} parent=1 // pred_check_branch
      %117 = sbr.rel (0) target = $region73
    $region72: #{tpu_custom_call.1} parent=1 // pred_region
      %119 = dma.done [#allocation6], 256
    $region73: #{tpu_custom_call.1} parent=1 // pred_fallthru
      _
    // Predicated region
    $region74: #{tpu_custom_call.1} parent=1 // pred_check
      _
    $region75: #{tpu_custom_call.1} parent=1 // pred_check_branch
      %121 = sbr.rel (0) target = $region77
    $region76: #{tpu_custom_call.1} parent=1 // pred_region
      %123 = dma.done [#allocation6], 32
    $region77: #{tpu_custom_call.1} parent=1 // pred_fallthru
      _
    // Predicated region
    $region78: #{tpu_custom_call.1} parent=1 // pred_check
      _
    $region79: #{tpu_custom_call.1} parent=1 // pred_check_branch
      %125 = sbr.rel (0) target = $region81
    $region80: #{tpu_custom_call.1} parent=1 // pred_region
      %127 = dma.done [#allocation9], 32
    $region81: #{tpu_custom_call.1} parent=1 // pred_fallthru
      _
    // Predicated region
    $region82: #{tpu_custom_call.1} parent=1 // pred_check
      _
    $region83: #{tpu_custom_call.1} parent=1 // pred_check_branch
      %129 = sbr.rel (0) target = $region85
    $region84: #{tpu_custom_call.1} parent=1 // pred_region
      %131 = dma.done [#allocation9], 32
    $region85: #{tpu_custom_call.1} parent=1 // pred_fallthru
      _
    %v132 = vld [vmem:[#allocation2] sm:$0xff]
    %v133 = vld [vmem:[#allocation2 + $0x8] sm:$0xff]
    %v134 = vld [vmem:[#allocation5] sm:$0xff]
    %v135 = vld [vmem:[#allocation5 + $0x8] sm:$0xff]
    %v136 = vld [vmem:[%s6] sm:$0x1]
    %v137 = vld [vmem:[#allocation8] sm:$0x1]
    %vm138 = vcmask 261120
    %v139 = vsel %vm138, %v132, 0.0
    %140 = vadd.xlane.f32.xlu0 %v139
    %v141 = vpop.xlane.xlu0 %140
    %v142 = vsel %vm138, %v133, 0.0
    %143 = vadd.xlane.f32.xlu0 %v142
    %v144 = vpop.xlane.xlu0 %143
    %v145 = vrcp.pop 32.0
    %v146 = vmul.f32 32.0, %v145
    %v147 = vsub.f32 1.0, %v146
    %v148 = vmul.f32 %v145, %v147
    %v149 = vadd.f32 %v145, %v148
    %vm150 = vweird.f32 %v145
    %v151 = vsel %vm150, %v145, %v149
    %v152 = vmul.f32 %v141, %v151
    %v153 = vmul.f32 %v144, %v151
    %v154 = vsub.f32 %v132, %v152
    %v155 = vsub.f32 %v133, %v153
    %v156 = vmul.f32 %v154, %v154
    %v157 = vmul.f32 %v155, %v155
    %v158 = vsel %vm138, %v156, 0.0
    %159 = vadd.xlane.f32.xlu0 %v158
    %v160 = vpop.xlane.xlu0 %159
    %v161 = vsel %vm138, %v157, 0.0
    %162 = vadd.xlane.f32.xlu0 %v161
    %v163 = vpop.xlane.xlu0 %162
    %v164 = vmul.f32 %v160, 0.032258064
    %v165 = vmul.f32 %v163, 0.032258064
    %v166 = vrsqrt.pop %v164
    %v167 = vmul.f32 %v166, %v164
    %v168 = vmul.f32 %v167, %v166
    %v169 = vmul.f32 0.5, %v168
    %v170 = vsub.f32 1.5, %v169
    %v171 = vmul.f32 %v166, %v170
    %v172 = vmul.f32 %v164, %v171
    %vm173 = vcmp.eq.f32.partialorder %v164, inf
    %v174 = vsel %vm173, %v164, %v172
    %vm175 = vcmp.eq.f32.partialorder %v164, 0.0
    %v176 = vand.u32 %v164, 2147483648
    %v177 = vsel %vm175, %v176, %v174
    %v178 = vrsqrt.pop %v165
    %v179 = vmul.f32 %v178, %v165
    %v180 = vmul.f32 %v179, %v178
    %v181 = vmul.f32 0.5, %v180
    %v182 = vsub.f32 1.5, %v181
    %v183 = vmul.f32 %v178, %v182
    %v184 = vmul.f32 %v165, %v183
    %vm185 = vcmp.eq.f32.partialorder %v165, inf
    %v186 = vsel %vm185, %v165, %v184
    %vm187 = vcmp.eq.f32.partialorder %v165, 0.0
    %v188 = vand.u32 %v165, 2147483648
    %v189 = vsel %vm187, %v188, %v186
    %v190 = vadd.f32 %v177, 1e-06
    %v191 = vadd.f32 %v189, 1e-06
    %v192 = vrcp.pop %v190
    %v193 = vmul.f32 %v190, %v192
    %v194 = vsub.f32 1.0, %v193
    %v195 = vmul.f32 %v192, %v194
    %v196 = vadd.f32 %v192, %v195
    %vm197 = vweird.f32 %v190
    %vm198 = vweird.f32 %v192
    %vm199 = vmor %vm197, %vm198
    %v200 = vsel %vm199, %v192, %v196
    %v201 = vand.u32 2147483647, %v190
    %vm202 = vcmp.eq.f32.partialorder %v201, 8.507059e+37
    %v203 = vand.u32 %v190, 2147483648
    %v204 = vor.u32 1.1754944e-38, %v203
    %v205 = vsel %vm202, %v204, %v200
    %v206 = vrcp.pop %v191
    %v207 = vmul.f32 %v191, %v206
    %v208 = vsub.f32 1.0, %v207
    %v209 = vmul.f32 %v206, %v208
    %v210 = vadd.f32 %v206, %v209
    %vm211 = vweird.f32 %v191
    %vm212 = vweird.f32 %v206
    %vm213 = vmor %vm211, %vm212
    %v214 = vsel %vm213, %v206, %v210
    %v215 = vand.u32 2147483647, %v191
    %vm216 = vcmp.eq.f32.partialorder %v215, 8.507059e+37
    %v217 = vand.u32 %v191, 2147483648
    %v218 = vor.u32 1.1754944e-38, %v217
    %v219 = vsel %vm216, %v218, %v214
    %v221 = vperm.slane %v136, 0
    %v223 = vmul.f32 %v221, %v154
    %v224 = vmul.f32 %v221, %v155
    %v225 = vmul.f32 %v223, %v205
    %v226 = vmul.f32 %v224, %v219
    %v228 = vperm.slane %v137, 0
    %v230 = vadd.f32 %v225, %v228
    %v231 = vadd.f32 %v226, %v228
    %v232 = vld [vmem:[%s2] sm:$0xff]
    %v233 = vld [vmem:[%s2 + $0x8] sm:$0xff]
    %v234 = vld [vmem:[%s2 + $0x10] sm:$0xff]
    %v235 = vld [vmem:[%s2 + $0x18] sm:$0xff]
    %v236 = vld [vmem:[%s3] sm:$0x1]
    %v238 = vperm.slane %v236, 0
    %v241 = vsel %vm138, %v230, 0
    %v244 = vsel %vm138, %v231, 0
    %246 = vmatpush.msra.mxu0 0.0
    %247 = vmatpush.msra.mxu0 0.0
    %248 = vmatpush.msra.mxu0 0.0
    %249 = vmatpush.msra.mxu0 0.0
    %250 = vmatpush.msra.mxu0 0.0
    %251 = vmatpush.msra.mxu0 0.0
    %252 = vmatpush.msra.mxu0 0.0
    %253 = vmatpush.msra.mxu0 0.0
    %254 = vmatpush.msra.mxu0 0.0
    %255 = vmatpush.msra.mxu0 0.0
    %256 = vmatpush.msra.mxu0 0.0
    %257 = vmatpush.msra.mxu0 0.0
    %258 = vmatpush.msra.mxu0 %v235
    %259 = vmatpush.msra.mxu0 %v234
    %260 = vmatpush.msra.mxu0 %v233
    %261 = vmatpush.msra.mxu0 %v232
    %262 = vmatmul.f32.gmra.mxu0 %v241
    %v263 = vpop.f32.mrf.mxu0
    %v264 = vadd.f32 %v238, %v263
    %265 = vmatmul.f32.gmra.mxu0 %v244
    %v266 = vpop.f32.mrf.mxu0
    %v267 = vadd.f32 %v238, %v266
    %268 = vdwg.mxu0
    %271 = vrot.lane.b32.xlu0 %v264, 96
    %v272 = vpop.permute.xlu0 %271
    %273 = vrot.lane.b32.xlu0 %v267, 96
    %v274 = vpop.permute.xlu0 %273
    %vm275 = vcmask 64512
    %v276 = vsel %vm275, %v264, 0
    %v278 = vsel %vm275, %v267, 0
    %v280 = vsel %vm275, %v272, 0
    %v282 = vsel %vm275, %v274, 0
    %284 = vmatpush.xpose.msra.mxu0 0.0
    %285 = vmatpush.xpose.msra.mxu0 0.0
    %286 = vmatpush.xpose.msra.mxu0 0.0
    %287 = vmatpush.xpose.msra.mxu0 0.0
    %288 = vmatpush.xpose.msra.mxu0 0.0
    %289 = vmatpush.xpose.msra.mxu0 0.0
    %290 = vmatpush.xpose.msra.mxu0 0.0
    %291 = vmatpush.xpose.msra.mxu0 0.0
    %292 = vmatpush.xpose.msra.mxu0 0.0
    %293 = vmatpush.xpose.msra.mxu0 0.0
    %294 = vmatpush.xpose.msra.mxu0 0.0
    %295 = vmatpush.xpose.msra.mxu0 0.0
    %296 = vmatpush.xpose.msra.mxu0 0.0
    %297 = vmatpush.xpose.msra.mxu0 0.0
    %298 = vmatpush.xpose.msra.mxu0 %v282
    %299 = vmatpush.xpose.msra.mxu0 %v280
    %300 = vmatmul.f32.gmra.mxu0 %v276
    %v301 = vpop.f32.mrf.mxu0
    %v302 = vadd.f32 %v134, %v301
    %303 = vmatmul.f32.gmra.mxu0 %v278
    %v304 = vpop.f32.mrf.mxu0
    %v305 = vadd.f32 %v135, %v304
    %306 = vdwg.mxu0
    %v307 = vmul.f32 %v302, 1.442695
    %v308 = vpow.pop %v307
    %v309 = vmul.f32 %v305, 1.442695
    %v310 = vpow.pop %v309
    %vm311 = vcmask 130048
    %v312 = vsel %vm311, %v308, 0.0
    %313 = vadd.xlane.f32.xlu0 %v312
    %v314 = vpop.xlane.xlu0 %313
    %v315 = vsel %vm311, %v310, 0.0
    %316 = vadd.xlane.f32.xlu0 %v315
    %v317 = vpop.xlane.xlu0 %316
    %v318 = vrcp.pop %v314
    %v319 = vrcp.pop %v317
    %v320 = vmul.f32 %v308, %v318
    %v321 = vmul.f32 %v310, %v319
    %322 = vrot.lane.b32.xlu0 %v264, 64
    %v323 = vpop.permute.xlu0 %322
    %324 = vrot.lane.b32.xlu0 %v267, 64
    %v325 = vpop.permute.xlu0 %324
    %v329 = vsel %vm311, %v320, 0
    %v332 = vsel %vm311, %v321, 0
    %334 = vmatpush.msra.mxu0 0.0
    %335 = vmatpush.msra.mxu0 0.0
    %336 = vmatpush.msra.mxu0 0.0
    %337 = vmatpush.msra.mxu0 0.0
    %338 = vmatpush.msra.mxu0 0.0
    %339 = vmatpush.msra.mxu0 0.0
    %340 = vmatpush.msra.mxu0 0.0
    %341 = vmatpush.msra.mxu0 0.0
    %342 = vmatpush.msra.mxu0 0.0
    %343 = vmatpush.msra.mxu0 0.0
    %344 = vmatpush.msra.mxu0 0.0
    %345 = vmatpush.msra.mxu0 0.0
    %346 = vmatpush.msra.mxu0 0.0
    %347 = vmatpush.msra.mxu0 0.0
    %348 = vmatpush.msra.mxu0 %v325
    %349 = vmatpush.msra.mxu0 %v323
    %350 = vmatmul.f32.gmra.mxu0 %v329
    %v351 = vpop.f32.mrf.mxu0
    %v352 = vadd.f32 0.0, %v351
    %353 = vmatmul.f32.gmra.mxu0 %v332
    %v354 = vpop.f32.mrf.mxu0
    %v355 = vadd.f32 0.0, %v354
    %356 = vdwg.mxu0
    %357 = vrot.lane.b32.xlu0 %v264, 120
    %v358 = vpop.permute.xlu0 %357
    %359 = vrot.lane.b32.xlu0 %v267, 120
    %v360 = vpop.permute.xlu0 %359
    %361 = vrot.lane.b32.xlu0 %v264, 88
    %v362 = vpop.permute.xlu0 %361
    %363 = vrot.lane.b32.xlu0 %v267, 88
    %v364 = vpop.permute.xlu0 %363
    %v365 = vsel %vm275, %v358, 0
    %v367 = vsel %vm275, %v360, 0
    %v369 = vsel %vm275, %v362, 0
    %v371 = vsel %vm275, %v364, 0
    %373 = vmatpush.xpose.msra.mxu0 0.0
    %374 = vmatpush.xpose.msra.mxu0 0.0
    %375 = vmatpush.xpose.msra.mxu0 0.0
    %376 = vmatpush.xpose.msra.mxu0 0.0
    %377 = vmatpush.xpose.msra.mxu0 0.0
    %378 = vmatpush.xpose.msra.mxu0 0.0
    %379 = vmatpush.xpose.msra.mxu0 0.0
    %380 = vmatpush.xpose.msra.mxu0 0.0
    %381 = vmatpush.xpose.msra.mxu0 0.0
    %382 = vmatpush.xpose.msra.mxu0 0.0
    %383 = vmatpush.xpose.msra.mxu0 0.0
    %384 = vmatpush.xpose.msra.mxu0 0.0
    %385 = vmatpush.xpose.msra.mxu0 0.0
    %386 = vmatpush.xpose.msra.mxu0 0.0
    %387 = vmatpush.xpose.msra.mxu0 %v371
    %388 = vmatpush.xpose.msra.mxu0 %v369
    %389 = vmatmul.f32.gmra.mxu0 %v365
    %v390 = vpop.f32.mrf.mxu0
    %v391 = vadd.f32 %v134, %v390
    %392 = vmatmul.f32.gmra.mxu0 %v367
    %v393 = vpop.f32.mrf.mxu0
    %v394 = vadd.f32 %v135, %v393
    %395 = vdwg.mxu0
    %v396 = vmul.f32 %v391, 1.442695
    %v397 = vpow.pop %v396
    %v398 = vmul.f32 %v394, 1.442695
    %v399 = vpow.pop %v398
    %v400 = vsel %vm311, %v397, 0.0
    %401 = vadd.xlane.f32.xlu0 %v400
    %v402 = vpop.xlane.xlu0 %401
    %v403 = vsel %vm311, %v399, 0.0
    %404 = vadd.xlane.f32.xlu0 %v403
    %v405 = vpop.xlane.xlu0 %404
    %v406 = vrcp.pop %v402
    %v407 = vrcp.pop %v405
    %v408 = vmul.f32 %v397, %v406
    %v409 = vmul.f32 %v399, %v407
    %410 = vrot.lane.b32.xlu0 %v264, 56
    %v411 = vpop.permute.xlu0 %410
    %412 = vrot.lane.b32.xlu0 %v267, 56
    %v413 = vpop.permute.xlu0 %412
    %v417 = vsel %vm311, %v408, 0
    %v420 = vsel %vm311, %v409, 0
    %422 = vmatpush.msra.mxu0 0.0
    %423 = vmatpush.msra.mxu0 0.0
    %424 = vmatpush.msra.mxu0 0.0
    %425 = vmatpush.msra.mxu0 0.0
    %426 = vmatpush.msra.mxu0 0.0
    %427 = vmatpush.msra.mxu0 0.0
    %428 = vmatpush.msra.mxu0 0.0
    %429 = vmatpush.msra.mxu0 0.0
    %430 = vmatpush.msra.mxu0 0.0
    %431 = vmatpush.msra.mxu0 0.0
    %432 = vmatpush.msra.mxu0 0.0
    %433 = vmatpush.msra.mxu0 0.0
    %434 = vmatpush.msra.mxu0 0.0
    %435 = vmatpush.msra.mxu0 0.0
    %436 = vmatpush.msra.mxu0 %v413
    %437 = vmatpush.msra.mxu0 %v411
    %438 = vmatmul.f32.gmra.mxu0 %v417
    %v439 = vpop.f32.mrf.mxu0
    %v440 = vadd.f32 0.0, %v439
    %441 = vmatmul.f32.gmra.mxu0 %v420
    %v442 = vpop.f32.mrf.mxu0
    %v443 = vadd.f32 0.0, %v442
    %444 = vdwg.mxu0
    %445 = vrot.lane.b32.xlu0 %v264, 112
    %v446 = vpop.permute.xlu0 %445
    %447 = vrot.lane.b32.xlu0 %v267, 112
    %v448 = vpop.permute.xlu0 %447
    %449 = vrot.lane.b32.xlu0 %v264, 80
    %v450 = vpop.permute.xlu0 %449
    %451 = vrot.lane.b32.xlu0 %v267, 80
    %v452 = vpop.permute.xlu0 %451
    %v453 = vsel %vm275, %v446, 0
    %v455 = vsel %vm275, %v448, 0
    %v457 = vsel %vm275, %v450, 0
    %v459 = vsel %vm275, %v452, 0
    %461 = vmatpush.xpose.msra.mxu0 0.0
    %462 = vmatpush.xpose.msra.mxu0 0.0
    %463 = vmatpush.xpose.msra.mxu0 0.0
    %464 = vmatpush.xpose.msra.mxu0 0.0
    %465 = vmatpush.xpose.msra.mxu0 0.0
    %466 = vmatpush.xpose.msra.mxu0 0.0
    %467 = vmatpush.xpose.msra.mxu0 0.0
    %468 = vmatpush.xpose.msra.mxu0 0.0
    %469 = vmatpush.xpose.msra.mxu0 0.0
    %470 = vmatpush.xpose.msra.mxu0 0.0
    %471 = vmatpush.xpose.msra.mxu0 0.0
    %472 = vmatpush.xpose.msra.mxu0 0.0
    %473 = vmatpush.xpose.msra.mxu0 0.0
    %474 = vmatpush.xpose.msra.mxu0 0.0
    %475 = vmatpush.xpose.msra.mxu0 %v459
    %476 = vmatpush.xpose.msra.mxu0 %v457
    %477 = vmatmul.f32.gmra.mxu0 %v453
    %v478 = vpop.f32.mrf.mxu0
    %v479 = vadd.f32 %v134, %v478
    %480 = vmatmul.f32.gmra.mxu0 %v455
    %v481 = vpop.f32.mrf.mxu0
    %v482 = vadd.f32 %v135, %v481
    %483 = vdwg.mxu0
    %v484 = vmul.f32 %v479, 1.442695
    %v485 = vpow.pop %v484
    %v486 = vmul.f32 %v482, 1.442695
    %v487 = vpow.pop %v486
    %v488 = vsel %vm311, %v485, 0.0
    %489 = vadd.xlane.f32.xlu0 %v488
    %v490 = vpop.xlane.xlu0 %489
    %v491 = vsel %vm311, %v487, 0.0
    %492 = vadd.xlane.f32.xlu0 %v491
    %v493 = vpop.xlane.xlu0 %492
    %v494 = vrcp.pop %v490
    %v495 = vrcp.pop %v493
    %v496 = vmul.f32 %v485, %v494
    %v497 = vmul.f32 %v487, %v495
    %498 = vrot.lane.b32.xlu0 %v264, 48
    %v499 = vpop.permute.xlu0 %498
    %500 = vrot.lane.b32.xlu0 %v267, 48
    %v501 = vpop.permute.xlu0 %500
    %v505 = vsel %vm311, %v496, 0
    %v508 = vsel %vm311, %v497, 0
    %510 = vmatpush.msra.mxu0 0.0
    %511 = vmatpush.msra.mxu0 0.0
    %512 = vmatpush.msra.mxu0 0.0
    %513 = vmatpush.msra.mxu0 0.0
    %514 = vmatpush.msra.mxu0 0.0
    %515 = vmatpush.msra.mxu0 0.0
    %516 = vmatpush.msra.mxu0 0.0
    %517 = vmatpush.msra.mxu0 0.0
    %518 = vmatpush.msra.mxu0 0.0
    %519 = vmatpush.msra.mxu0 0.0
    %520 = vmatpush.msra.mxu0 0.0
    %521 = vmatpush.msra.mxu0 0.0
    %522 = vmatpush.msra.mxu0 0.0
    %523 = vmatpush.msra.mxu0 0.0
    %524 = vmatpush.msra.mxu0 %v501
    %525 = vmatpush.msra.mxu0 %v499
    %526 = vmatmul.f32.gmra.mxu0 %v505
    %v527 = vpop.f32.mrf.mxu0
    %v528 = vadd.f32 0.0, %v527
    %529 = vmatmul.f32.gmra.mxu0 %v508
    %v530 = vpop.f32.mrf.mxu0
    %v531 = vadd.f32 0.0, %v530
    %532 = vdwg.mxu0
    %533 = vrot.lane.b32.xlu0 %v264, 104
    %v534 = vpop.permute.xlu0 %533
    %535 = vrot.lane.b32.xlu0 %v267, 104
    %v536 = vpop.permute.xlu0 %535
    %537 = vrot.lane.b32.xlu0 %v264, 72
    %v538 = vpop.permute.xlu0 %537
    %539 = vrot.lane.b32.xlu0 %v267, 72
    %v540 = vpop.permute.xlu0 %539
    %v541 = vsel %vm275, %v534, 0
    %v543 = vsel %vm275, %v536, 0
    %v545 = vsel %vm275, %v538, 0
    %v547 = vsel %vm275, %v540, 0
    %549 = vmatpush.xpose.msra.mxu0 0.0
    %550 = vmatpush.xpose.msra.mxu0 0.0
    %551 = vmatpush.xpose.msra.mxu0 0.0
    %552 = vmatpush.xpose.msra.mxu0 0.0
    %553 = vmatpush.xpose.msra.mxu0 0.0
    %554 = vmatpush.xpose.msra.mxu0 0.0
    %555 = vmatpush.xpose.msra.mxu0 0.0
    %556 = vmatpush.xpose.msra.mxu0 0.0
    %557 = vmatpush.xpose.msra.mxu0 0.0
    %558 = vmatpush.xpose.msra.mxu0 0.0
    %559 = vmatpush.xpose.msra.mxu0 0.0
    %560 = vmatpush.xpose.msra.mxu0 0.0
    %561 = vmatpush.xpose.msra.mxu0 0.0
    %562 = vmatpush.xpose.msra.mxu0 0.0
    %563 = vmatpush.xpose.msra.mxu0 %v547
    %564 = vmatpush.xpose.msra.mxu0 %v545
    %565 = vmatmul.f32.gmra.mxu0 %v541
    %v566 = vpop.f32.mrf.mxu0
    %v567 = vadd.f32 %v134, %v566
    %568 = vmatmul.f32.gmra.mxu0 %v543
    %v569 = vpop.f32.mrf.mxu0
    %v570 = vadd.f32 %v135, %v569
    %571 = vdwg.mxu0
    %v572 = vmul.f32 %v567, 1.442695
    %v573 = vpow.pop %v572
    %v574 = vmul.f32 %v570, 1.442695
    %v575 = vpow.pop %v574
    %v576 = vsel %vm311, %v573, 0.0
    %577 = vadd.xlane.f32.xlu0 %v576
    %v578 = vpop.xlane.xlu0 %577
    %v579 = vsel %vm311, %v575, 0.0
    %580 = vadd.xlane.f32.xlu0 %v579
    %v581 = vpop.xlane.xlu0 %580
    %v582 = vrcp.pop %v578
    %v583 = vrcp.pop %v581
    %v584 = vmul.f32 %v573, %v582
    %v585 = vmul.f32 %v575, %v583
    %586 = vrot.lane.b32.xlu0 %v264, 40
    %v587 = vpop.permute.xlu0 %586
    %588 = vrot.lane.b32.xlu0 %v267, 40
    %v589 = vpop.permute.xlu0 %588
    %v593 = vsel %vm311, %v584, 0
    %v596 = vsel %vm311, %v585, 0
    %598 = vmatpush.msra.mxu0 0.0
    %599 = vmatpush.msra.mxu0 0.0
    %600 = vmatpush.msra.mxu0 0.0
    %601 = vmatpush.msra.mxu0 0.0
    %602 = vmatpush.msra.mxu0 0.0
    %603 = vmatpush.msra.mxu0 0.0
    %604 = vmatpush.msra.mxu0 0.0
    %605 = vmatpush.msra.mxu0 0.0
    %606 = vmatpush.msra.mxu0 0.0
    %607 = vmatpush.msra.mxu0 0.0
    %608 = vmatpush.msra.mxu0 0.0
    %609 = vmatpush.msra.mxu0 0.0
    %610 = vmatpush.msra.mxu0 0.0
    %611 = vmatpush.msra.mxu0 0.0
    %612 = vmatpush.msra.mxu0 %v589
    %613 = vmatpush.msra.mxu0 %v587
    %614 = vmatmul.f32.gmra.mxu0 %v593
    %v615 = vpop.f32.mrf.mxu0
    %v616 = vadd.f32 0.0, %v615
    %617 = vmatmul.f32.gmra.mxu0 %v596
    %v618 = vpop.f32.mrf.mxu0
    %v619 = vadd.f32 0.0, %v618
    %620 = vdwg.mxu0
    %623 = vrot.lane.b32.xlu0 %v440, 8
    %v624 = vpop.permute.xlu0 %623
    %625 = vrot.lane.b32.xlu0 %v443, 8
    %v626 = vpop.permute.xlu0 %625
    %631 = vrot.lane.b32.xlu0 %v528, 16
    %v632 = vpop.permute.xlu0 %631
    %633 = vrot.lane.b32.xlu0 %v531, 16
    %v634 = vpop.permute.xlu0 %633
    %639 = vrot.lane.b32.xlu0 %v616, 24
    %v640 = vpop.permute.xlu0 %639
    %641 = vrot.lane.b32.xlu0 %v619, 24
    %v642 = vpop.permute.xlu0 %641
    %v645 = vsel %vm275, %v352, %v624
    %v646 = vsel %vm275, %v355, %v626
    %v647 = vsel %vm311, %v645, %v632
    %v648 = vsel %vm311, %v646, %v634
    %vm649 = vcmask 195584
    %v650 = vsel %vm649, %v647, %v640
    %v651 = vsel %vm649, %v648, %v642
    %v652 = vld [vmem:[%s4] sm:$0xff]
    %v653 = vld [vmem:[%s4 + $0x8] sm:$0xff]
    %v654 = vld [vmem:[%s4 + $0x10] sm:$0xff]
    %v655 = vld [vmem:[%s4 + $0x18] sm:$0xff]
    %v657 = vsel %vm138, %v650, 0
    %v660 = vsel %vm138, %v651, 0
    %662 = vmatpush.msra.mxu0 0.0
    %663 = vmatpush.msra.mxu0 0.0
    %664 = vmatpush.msra.mxu0 0.0
    %665 = vmatpush.msra.mxu0 0.0
    %666 = vmatpush.msra.mxu0 0.0
    %667 = vmatpush.msra.mxu0 0.0
    %668 = vmatpush.msra.mxu0 0.0
    %669 = vmatpush.msra.mxu0 0.0
    %670 = vmatpush.msra.mxu0 0.0
    %671 = vmatpush.msra.mxu0 0.0
    %672 = vmatpush.msra.mxu0 0.0
    %673 = vmatpush.msra.mxu0 0.0
    %674 = vmatpush.msra.mxu0 %v655
    %675 = vmatpush.msra.mxu0 %v654
    %676 = vmatpush.msra.mxu0 %v653
    %677 = vmatpush.msra.mxu0 %v652
    %678 = vmatmul.f32.gmra.mxu0 %v657
    %v679 = vpop.f32.mrf.mxu0
    %v680 = vadd.f32 0.0, %v679
    %681 = vmatmul.f32.gmra.mxu0 %v660
    %v682 = vpop.f32.mrf.mxu0
    %v683 = vadd.f32 0.0, %v682
    %684 = vdwg.mxu0
    %v685 = vadd.f32 %v132, %v680
    %v686 = vadd.f32 %v133, %v683
    %v687 = vld [vmem:[#allocation7] sm:$0x1]
    %v689 = vperm.slane %v687, 0
    %v691 = vadd.f32 %v685, %v689
    %v692 = vadd.f32 %v686, %v689
    %v693 = vld [vmem:[%s12] sm:$0x1]
    %v694 = vld [vmem:[#allocation10] sm:$0x1]
    %v695 = vsel %vm138, %v691, 0.0
    %696 = vadd.xlane.f32.xlu0 %v695
    %v697 = vpop.xlane.xlu0 %696
    %v698 = vsel %vm138, %v692, 0.0
    %699 = vadd.xlane.f32.xlu0 %v698
    %v700 = vpop.xlane.xlu0 %699
    %v701 = vmul.f32 %v697, %v151
    %v702 = vmul.f32 %v700, %v151
    %v703 = vsub.f32 %v691, %v701
    %v704 = vsub.f32 %v692, %v702
    %v705 = vmul.f32 %v703, %v703
    %v706 = vmul.f32 %v704, %v704
    %v707 = vsel %vm138, %v705, 0.0
    %708 = vadd.xlane.f32.xlu0 %v707
    %v709 = vpop.xlane.xlu0 %708
    %v710 = vsel %vm138, %v706, 0.0
    %711 = vadd.xlane.f32.xlu0 %v710
    %v712 = vpop.xlane.xlu0 %711
    %v713 = vmul.f32 %v709, 0.032258064
    %v714 = vmul.f32 %v712, 0.032258064
    %v715 = vrsqrt.pop %v713
    %v716 = vmul.f32 %v715, %v713
    %v717 = vmul.f32 %v716, %v715
    %v718 = vmul.f32 0.5, %v717
    %v719 = vsub.f32 1.5, %v718
    %v720 = vmul.f32 %v715, %v719
    %v721 = vmul.f32 %v713, %v720
    %vm722 = vcmp.eq.f32.partialorder %v713, inf
    %v723 = vsel %vm722, %v713, %v721
    %vm724 = vcmp.eq.f32.partialorder %v713, 0.0
    %v725 = vand.u32 %v713, 2147483648
    %v726 = vsel %vm724, %v725, %v723
    %v727 = vrsqrt.pop %v714
    %v728 = vmul.f32 %v727, %v714
    %v729 = vmul.f32 %v728, %v727
    %v730 = vmul.f32 0.5, %v729
    %v731 = vsub.f32 1.5, %v730
    %v732 = vmul.f32 %v727, %v731
    %v733 = vmul.f32 %v714, %v732
    %vm734 = vcmp.eq.f32.partialorder %v714, inf
    %v735 = vsel %vm734, %v714, %v733
    %vm736 = vcmp.eq.f32.partialorder %v714, 0.0
    %v737 = vand.u32 %v714, 2147483648
    %v738 = vsel %vm736, %v737, %v735
    %v739 = vadd.f32 %v726, 1e-06
    %v740 = vadd.f32 %v738, 1e-06
    %v741 = vrcp.pop %v739
    %v742 = vmul.f32 %v739, %v741
    %v743 = vsub.f32 1.0, %v742
    %v744 = vmul.f32 %v741, %v743
    %v745 = vadd.f32 %v741, %v744
    %vm746 = vweird.f32 %v739
    %vm747 = vweird.f32 %v741
    %vm748 = vmor %vm746, %vm747
    %v749 = vsel %vm748, %v741, %v745
    %v750 = vand.u32 2147483647, %v739
    %vm751 = vcmp.eq.f32.partialorder %v750, 8.507059e+37
    %v752 = vand.u32 %v739, 2147483648
    %v753 = vor.u32 1.1754944e-38, %v752
    %v754 = vsel %vm751, %v753, %v749
    %v755 = vrcp.pop %v740
    %v756 = vmul.f32 %v740, %v755
    %v757 = vsub.f32 1.0, %v756
    %v758 = vmul.f32 %v755, %v757
    %v759 = vadd.f32 %v755, %v758
    %vm760 = vweird.f32 %v740
    %vm761 = vweird.f32 %v755
    %vm762 = vmor %vm760, %vm761
    %v763 = vsel %vm762, %v755, %v759
    %v764 = vand.u32 2147483647, %v740
    %vm765 = vcmp.eq.f32.partialorder %v764, 8.507059e+37
    %v766 = vand.u32 %v740, 2147483648
    %v767 = vor.u32 1.1754944e-38, %v766
    %v768 = vsel %vm765, %v767, %v763
    %v770 = vperm.slane %v693, 0
    %v772 = vmul.f32 %v770, %v703
    %v773 = vmul.f32 %v770, %v704
    %v774 = vmul.f32 %v772, %v754
    %v775 = vmul.f32 %v773, %v768
    %v777 = vperm.slane %v694, 0
    %v779 = vadd.f32 %v774, %v777
    %v780 = vadd.f32 %v775, %v777
    %v781 = vld [vmem:[%s8] sm:$0xff]
    %v782 = vld [vmem:[%s8 + $0x8] sm:$0xff]
    %v783 = vld [vmem:[%s8 + $0x10] sm:$0xff]
    %v784 = vld [vmem:[%s8 + $0x18] sm:$0xff]
    %v785 = vld [vmem:[%s9] sm:$0x1]
    %v787 = vperm.slane %v785, 0
    %v790 = vsel %vm138, %v779, 0
    %v793 = vsel %vm138, %v780, 0
    %795 = vmatpush.msra.mxu0 0.0
    %796 = vmatpush.msra.mxu0 0.0
    %797 = vmatpush.msra.mxu0 0.0
    %798 = vmatpush.msra.mxu0 0.0
    %799 = vmatpush.msra.mxu0 0.0
    %800 = vmatpush.msra.mxu0 0.0
    %801 = vmatpush.msra.mxu0 0.0
    %802 = vmatpush.msra.mxu0 0.0
    %803 = vmatpush.msra.mxu0 0.0
    %804 = vmatpush.msra.mxu0 0.0
    %805 = vmatpush.msra.mxu0 0.0
    %806 = vmatpush.msra.mxu0 0.0
    %807 = vmatpush.msra.mxu0 %v784
    %808 = vmatpush.msra.mxu0 %v783
    %809 = vmatpush.msra.mxu0 %v782
    %810 = vmatpush.msra.mxu0 %v781
    %811 = vmatmul.f32.gmra.mxu0 %v790
    %v812 = vpop.f32.mrf.mxu0
    %v813 = vadd.f32 %v787, %v812
    %814 = vmatmul.f32.gmra.mxu0 %v793
    %v815 = vpop.f32.mrf.mxu0
    %v816 = vadd.f32 %v787, %v815
    %817 = vdwg.mxu0
    %v818 = vmax.f32 %v813, 0.0
    %v819 = vmax.f32 %v816, 0.0
    %v820 = vld [vmem:[%s10] sm:$0xff]
    %v821 = vld [vmem:[%s10 + $0x8] sm:$0xff]
    %v822 = vld [vmem:[%s10 + $0x10] sm:$0xff]
    %v823 = vld [vmem:[%s10 + $0x18] sm:$0xff]
    %v824 = vld [vmem:[%s10 + $0x20] sm:$0xff]
    %v825 = vld [vmem:[%s10 + $0x28] sm:$0xff]
    %v826 = vld [vmem:[%s10 + $0x30] sm:$0xff]
    %v827 = vld [vmem:[%s10 + $0x38] sm:$0xff]
    %vm828 = vcmask 523264
    %v830 = vsel %vm828, %v818, 0
    %v833 = vsel %vm828, %v819, 0
    %835 = vmatpush.msra.mxu0 0.0
    %836 = vmatpush.msra.mxu0 0.0
    %837 = vmatpush.msra.mxu0 0.0
    %838 = vmatpush.msra.mxu0 0.0
    %839 = vmatpush.msra.mxu0 0.0
    %840 = vmatpush.msra.mxu0 0.0
    %841 = vmatpush.msra.mxu0 0.0
    %842 = vmatpush.msra.mxu0 0.0
    %843 = vmatpush.msra.mxu0 %v827
    %844 = vmatpush.msra.mxu0 %v826
    %845 = vmatpush.msra.mxu0 %v825
    %846 = vmatpush.msra.mxu0 %v824
    %847 = vmatpush.msra.mxu0 %v823
    %848 = vmatpush.msra.mxu0 %v822
    %849 = vmatpush.msra.mxu0 %v821
    %850 = vmatpush.msra.mxu0 %v820
    %851 = vmatmul.f32.gmra.mxu0 %v830
    %v852 = vpop.f32.mrf.mxu0
    %v853 = vadd.f32 0.0, %v852
    %854 = vmatmul.f32.gmra.mxu0 %v833
    %v855 = vpop.f32.mrf.mxu0
    %v856 = vadd.f32 0.0, %v855
    %857 = vdwg.mxu0
    %v858 = vadd.f32 %v691, %v853
    %v859 = vadd.f32 %v692, %v856
    %v860 = vld [vmem:[%s11] sm:$0x1]
    %v862 = vperm.slane %v860, 0
    %v864 = vadd.f32 %v858, %v862
    %v865 = vadd.f32 %v859, %v862
    %s866 = scalar_lea.vmem %s6, 1
    %v867 = vld [vmem:[%s866] sm:$0x1]
    %s868 = scalar_lea.vmem [#allocation8], 1
    %v869 = vld [vmem:[%s868] sm:$0x1]
    %v870 = vsel %vm138, %v864, 0.0
    %871 = vadd.xlane.f32.xlu0 %v870
    %v872 = vpop.xlane.xlu0 %871
    %v873 = vsel %vm138, %v865, 0.0
    %874 = vadd.xlane.f32.xlu0 %v873
    %v875 = vpop.xlane.xlu0 %874
    %v876 = vmul.f32 %v872, %v151
    %v877 = vmul.f32 %v875, %v151
    %v878 = vsub.f32 %v864, %v876
    %v879 = vsub.f32 %v865, %v877
    %v880 = vmul.f32 %v878, %v878
    %v881 = vmul.f32 %v879, %v879
    %v882 = vsel %vm138, %v880, 0.0
    %883 = vadd.xlane.f32.xlu0 %v882
    %v884 = vpop.xlane.xlu0 %883
    %v885 = vsel %vm138, %v881, 0.0
    %886 = vadd.xlane.f32.xlu0 %v885
    %v887 = vpop.xlane.xlu0 %886
    %v888 = vmul.f32 %v884, 0.032258064
    %v889 = vmul.f32 %v887, 0.032258064
    %v890 = vrsqrt.pop %v888
    %v891 = vmul.f32 %v890, %v888
    %v892 = vmul.f32 %v891, %v890
    %v893 = vmul.f32 0.5, %v892
    %v894 = vsub.f32 1.5, %v893
    %v895 = vmul.f32 %v890, %v894
    %v896 = vmul.f32 %v888, %v895
    %vm897 = vcmp.eq.f32.partialorder %v888, inf
    %v898 = vsel %vm897, %v888, %v896
    %vm899 = vcmp.eq.f32.partialorder %v888, 0.0
    %v900 = vand.u32 %v888, 2147483648
    %v901 = vsel %vm899, %v900, %v898
    %v902 = vrsqrt.pop %v889
    %v903 = vmul.f32 %v902, %v889
    %v904 = vmul.f32 %v903, %v902
    %v905 = vmul.f32 0.5, %v904
    %v906 = vsub.f32 1.5, %v905
    %v907 = vmul.f32 %v902, %v906
    %v908 = vmul.f32 %v889, %v907
    %vm909 = vcmp.eq.f32.partialorder %v889, inf
    %v910 = vsel %vm909, %v889, %v908
    %vm911 = vcmp.eq.f32.partialorder %v889, 0.0
    %v912 = vand.u32 %v889, 2147483648
    %v913 = vsel %vm911, %v912, %v910
    %v914 = vadd.f32 %v901, 1e-06
    %v915 = vadd.f32 %v913, 1e-06
    %v916 = vrcp.pop %v914
    %v917 = vmul.f32 %v914, %v916
    %v918 = vsub.f32 1.0, %v917
    %v919 = vmul.f32 %v916, %v918
    %v920 = vadd.f32 %v916, %v919
    %vm921 = vweird.f32 %v914
    %vm922 = vweird.f32 %v916
    %vm923 = vmor %vm921, %vm922
    %v924 = vsel %vm923, %v916, %v920
    %v925 = vand.u32 2147483647, %v914
    %vm926 = vcmp.eq.f32.partialorder %v925, 8.507059e+37
    %v927 = vand.u32 %v914, 2147483648
    %v928 = vor.u32 1.1754944e-38, %v927
    %v929 = vsel %vm926, %v928, %v924
    %v930 = vrcp.pop %v915
    %v931 = vmul.f32 %v915, %v930
    %v932 = vsub.f32 1.0, %v931
    %v933 = vmul.f32 %v930, %v932
    %v934 = vadd.f32 %v930, %v933
    %vm935 = vweird.f32 %v915
    %vm936 = vweird.f32 %v930
    %vm937 = vmor %vm935, %vm936
    %v938 = vsel %vm937, %v930, %v934
    %v939 = vand.u32 2147483647, %v915
    %vm940 = vcmp.eq.f32.partialorder %v939, 8.507059e+37
    %v941 = vand.u32 %v915, 2147483648
    %v942 = vor.u32 1.1754944e-38, %v941
    %v943 = vsel %vm940, %v942, %v938
    %v945 = vperm.slane %v867, 0
    %v947 = vmul.f32 %v945, %v878
    %v948 = vmul.f32 %v945, %v879
    %v949 = vmul.f32 %v947, %v929
    %v950 = vmul.f32 %v948, %v943
    %v952 = vperm.slane %v869, 0
    %v954 = vadd.f32 %v949, %v952
    %v955 = vadd.f32 %v950, %v952
    %s956 = scalar_lea.vmem %s2, 32
    %v957 = vld [vmem:[%s956] sm:$0xff]
    %v958 = vld [vmem:[%s956 + $0x8] sm:$0xff]
    %v959 = vld [vmem:[%s956 + $0x10] sm:$0xff]
    %v960 = vld [vmem:[%s956 + $0x18] sm:$0xff]
    %s961 = scalar_lea.vmem %s3, 1
    %v962 = vld [vmem:[%s961] sm:$0x1]
    %v964 = vperm.slane %v962, 0
    %v967 = vsel %vm138, %v954, 0
    %v970 = vsel %vm138, %v955, 0
    %972 = vmatpush.msra.mxu0 0.0
    %973 = vmatpush.msra.mxu0 0.0
    %974 = vmatpush.msra.mxu0 0.0
    %975 = vmatpush.msra.mxu0 0.0
    %976 = vmatpush.msra.mxu0 0.0
    %977 = vmatpush.msra.mxu0 0.0
    %978 = vmatpush.msra.mxu0 0.0
    %979 = vmatpush.msra.mxu0 0.0
    %980 = vmatpush.msra.mxu0 0.0
    %981 = vmatpush.msra.mxu0 0.0
    %982 = vmatpush.msra.mxu0 0.0
    %983 = vmatpush.msra.mxu0 0.0
    %984 = vmatpush.msra.mxu0 %v960
    %985 = vmatpush.msra.mxu0 %v959
    %986 = vmatpush.msra.mxu0 %v958
    %987 = vmatpush.msra.mxu0 %v957
    %988 = vmatmul.f32.gmra.mxu0 %v967
    %v989 = vpop.f32.mrf.mxu0
    %v990 = vadd.f32 %v964, %v989
    %991 = vmatmul.f32.gmra.mxu0 %v970
    %v992 = vpop.f32.mrf.mxu0
    %v993 = vadd.f32 %v964, %v992
    %994 = vdwg.mxu0
    %997 = vrot.lane.b32.xlu0 %v990, 96
    %v998 = vpop.permute.xlu0 %997
    %999 = vrot.lane.b32.xlu0 %v993, 96
    %v1000 = vpop.permute.xlu0 %999
    %v1001 = vsel %vm275, %v990, 0
    %v1003 = vsel %vm275, %v993, 0
    %v1005 = vsel %vm275, %v998, 0
    %v1007 = vsel %vm275, %v1000, 0
    %1009 = vmatpush.xpose.msra.mxu0 0.0
    %1010 = vmatpush.xpose.msra.mxu0 0.0
    %1011 = vmatpush.xpose.msra.mxu0 0.0
    %1012 = vmatpush.xpose.msra.mxu0 0.0
    %1013 = vmatpush.xpose.msra.mxu0 0.0
    %1014 = vmatpush.xpose.msra.mxu0 0.0
    %1015 = vmatpush.xpose.msra.mxu0 0.0
    %1016 = vmatpush.xpose.msra.mxu0 0.0
    %1017 = vmatpush.xpose.msra.mxu0 0.0
    %1018 = vmatpush.xpose.msra.mxu0 0.0
    %1019 = vmatpush.xpose.msra.mxu0 0.0
    %1020 = vmatpush.xpose.msra.mxu0 0.0
    %1021 = vmatpush.xpose.msra.mxu0 0.0
    %1022 = vmatpush.xpose.msra.mxu0 0.0
    %1023 = vmatpush.xpose.msra.mxu0 %v1007
    %1024 = vmatpush.xpose.msra.mxu0 %v1005
    %1025 = vmatmul.f32.gmra.mxu0 %v1001
    %v1026 = vpop.f32.mrf.mxu0
    %v1027 = vadd.f32 %v134, %v1026
    %1028 = vmatmul.f32.gmra.mxu0 %v1003
    %v1029 = vpop.f32.mrf.mxu0
    %v1030 = vadd.f32 %v135, %v1029
    %1031 = vdwg.mxu0
    %v1032 = vmul.f32 %v1027, 1.442695
    %v1033 = vpow.pop %v1032
    %v1034 = vmul.f32 %v1030, 1.442695
    %v1035 = vpow.pop %v1034
    %v1036 = vsel %vm311, %v1033, 0.0
    %1037 = vadd.xlane.f32.xlu0 %v1036
    %v1038 = vpop.xlane.xlu0 %1037
    %v1039 = vsel %vm311, %v1035, 0.0
    %1040 = vadd.xlane.f32.xlu0 %v1039
    %v1041 = vpop.xlane.xlu0 %1040
    %v1042 = vrcp.pop %v1038
    %v1043 = vrcp.pop %v1041
    %v1044 = vmul.f32 %v1033, %v1042
    %v1045 = vmul.f32 %v1035, %v1043
    %1046 = vrot.lane.b32.xlu0 %v990, 64
    %v1047 = vpop.permute.xlu0 %1046
    %1048 = vrot.lane.b32.xlu0 %v993, 64
    %v1049 = vpop.permute.xlu0 %1048
    %v1053 = vsel %vm311, %v1044, 0
    %v1056 = vsel %vm311, %v1045, 0
    %1058 = vmatpush.msra.mxu0 0.0
    %1059 = vmatpush.msra.mxu0 0.0
    %1060 = vmatpush.msra.mxu0 0.0
    %1061 = vmatpush.msra.mxu0 0.0
    %1062 = vmatpush.msra.mxu0 0.0
    %1063 = vmatpush.msra.mxu0 0.0
    %1064 = vmatpush.msra.mxu0 0.0
    %1065 = vmatpush.msra.mxu0 0.0
    %1066 = vmatpush.msra.mxu0 0.0
    %1067 = vmatpush.msra.mxu0 0.0
    %1068 = vmatpush.msra.mxu0 0.0
    %1069 = vmatpush.msra.mxu0 0.0
    %1070 = vmatpush.msra.mxu0 0.0
    %1071 = vmatpush.msra.mxu0 0.0
    %1072 = vmatpush.msra.mxu0 %v1049
    %1073 = vmatpush.msra.mxu0 %v1047
    %1074 = vmatmul.f32.gmra.mxu0 %v1053
    %v1075 = vpop.f32.mrf.mxu0
    %v1076 = vadd.f32 0.0, %v1075
    %1077 = vmatmul.f32.gmra.mxu0 %v1056
    %v1078 = vpop.f32.mrf.mxu0
    %v1079 = vadd.f32 0.0, %v1078
    %1080 = vdwg.mxu0
    %1081 = vrot.lane.b32.xlu0 %v990, 120
    %v1082 = vpop.permute.xlu0 %1081
    %1083 = vrot.lane.b32.xlu0 %v993, 120
    %v1084 = vpop.permute.xlu0 %1083
    %1085 = vrot.lane.b32.xlu0 %v990, 88
    %v1086 = vpop.permute.xlu0 %1085
    %1087 = vrot.lane.b32.xlu0 %v993, 88
    %v1088 = vpop.permute.xlu0 %1087
    %v1089 = vsel %vm275, %v1082, 0
    %v1091 = vsel %vm275, %v1084, 0
    %v1093 = vsel %vm275, %v1086, 0
    %v1095 = vsel %vm275, %v1088, 0
    %1097 = vmatpush.xpose.msra.mxu0 0.0
    %1098 = vmatpush.xpose.msra.mxu0 0.0
    %1099 = vmatpush.xpose.msra.mxu0 0.0
    %1100 = vmatpush.xpose.msra.mxu0 0.0
    %1101 = vmatpush.xpose.msra.mxu0 0.0
    %1102 = vmatpush.xpose.msra.mxu0 0.0
    %1103 = vmatpush.xpose.msra.mxu0 0.0
    %1104 = vmatpush.xpose.msra.mxu0 0.0
    %1105 = vmatpush.xpose.msra.mxu0 0.0
    %1106 = vmatpush.xpose.msra.mxu0 0.0
    %1107 = vmatpush.xpose.msra.mxu0 0.0
    %1108 = vmatpush.xpose.msra.mxu0 0.0
    %1109 = vmatpush.xpose.msra.mxu0 0.0
    %1110 = vmatpush.xpose.msra.mxu0 0.0
    %1111 = vmatpush.xpose.msra.mxu0 %v1095
    %1112 = vmatpush.xpose.msra.mxu0 %v1093
    %1113 = vmatmul.f32.gmra.mxu0 %v1089
    %v1114 = vpop.f32.mrf.mxu0
    %v1115 = vadd.f32 %v134, %v1114
    %1116 = vmatmul.f32.gmra.mxu0 %v1091
    %v1117 = vpop.f32.mrf.mxu0
    %v1118 = vadd.f32 %v135, %v1117
    %1119 = vdwg.mxu0
    %v1120 = vmul.f32 %v1115, 1.442695
    %v1121 = vpow.pop %v1120
    %v1122 = vmul.f32 %v1118, 1.442695
    %v1123 = vpow.pop %v1122
    %v1124 = vsel %vm311, %v1121, 0.0
    %1125 = vadd.xlane.f32.xlu0 %v1124
    %v1126 = vpop.xlane.xlu0 %1125
    %v1127 = vsel %vm311, %v1123, 0.0
    %1128 = vadd.xlane.f32.xlu0 %v1127
    %v1129 = vpop.xlane.xlu0 %1128
    %v1130 = vrcp.pop %v1126
    %v1131 = vrcp.pop %v1129
    %v1132 = vmul.f32 %v1121, %v1130
    %v1133 = vmul.f32 %v1123, %v1131
    %1134 = vrot.lane.b32.xlu0 %v990, 56
    %v1135 = vpop.permute.xlu0 %1134
    %1136 = vrot.lane.b32.xlu0 %v993, 56
    %v1137 = vpop.permute.xlu0 %1136
    %v1141 = vsel %vm311, %v1132, 0
    %v1144 = vsel %vm311, %v1133, 0
    %1146 = vmatpush.msra.mxu0 0.0
    %1147 = vmatpush.msra.mxu0 0.0
    %1148 = vmatpush.msra.mxu0 0.0
    %1149 = vmatpush.msra.mxu0 0.0
    %1150 = vmatpush.msra.mxu0 0.0
    %1151 = vmatpush.msra.mxu0 0.0
    %1152 = vmatpush.msra.mxu0 0.0
    %1153 = vmatpush.msra.mxu0 0.0
    %1154 = vmatpush.msra.mxu0 0.0
    %1155 = vmatpush.msra.mxu0 0.0
    %1156 = vmatpush.msra.mxu0 0.0
    %1157 = vmatpush.msra.mxu0 0.0
    %1158 = vmatpush.msra.mxu0 0.0
    %1159 = vmatpush.msra.mxu0 0.0
    %1160 = vmatpush.msra.mxu0 %v1137
    %1161 = vmatpush.msra.mxu0 %v1135
    %1162 = vmatmul.f32.gmra.mxu0 %v1141
    %v1163 = vpop.f32.mrf.mxu0
    %v1164 = vadd.f32 0.0, %v1163
    %1165 = vmatmul.f32.gmra.mxu0 %v1144
    %v1166 = vpop.f32.mrf.mxu0
    %v1167 = vadd.f32 0.0, %v1166
    %1168 = vdwg.mxu0
    %1169 = vrot.lane.b32.xlu0 %v990, 112
    %v1170 = vpop.permute.xlu0 %1169
    %1171 = vrot.lane.b32.xlu0 %v993, 112
    %v1172 = vpop.permute.xlu0 %1171
    %1173 = vrot.lane.b32.xlu0 %v990, 80
    %v1174 = vpop.permute.xlu0 %1173
    %1175 = vrot.lane.b32.xlu0 %v993, 80
    %v1176 = vpop.permute.xlu0 %1175
    %v1177 = vsel %vm275, %v1170, 0
    %v1179 = vsel %vm275, %v1172, 0
    %v1181 = vsel %vm275, %v1174, 0
    %v1183 = vsel %vm275, %v1176, 0
    %1185 = vmatpush.xpose.msra.mxu0 0.0
    %1186 = vmatpush.xpose.msra.mxu0 0.0
    %1187 = vmatpush.xpose.msra.mxu0 0.0
    %1188 = vmatpush.xpose.msra.mxu0 0.0
    %1189 = vmatpush.xpose.msra.mxu0 0.0
    %1190 = vmatpush.xpose.msra.mxu0 0.0
    %1191 = vmatpush.xpose.msra.mxu0 0.0
    %1192 = vmatpush.xpose.msra.mxu0 0.0
    %1193 = vmatpush.xpose.msra.mxu0 0.0
    %1194 = vmatpush.xpose.msra.mxu0 0.0
    %1195 = vmatpush.xpose.msra.mxu0 0.0
    %1196 = vmatpush.xpose.msra.mxu0 0.0
    %1197 = vmatpush.xpose.msra.mxu0 0.0
    %1198 = vmatpush.xpose.msra.mxu0 0.0
    %1199 = vmatpush.xpose.msra.mxu0 %v1183
    %1200 = vmatpush.xpose.msra.mxu0 %v1181
    %1201 = vmatmul.f32.gmra.mxu0 %v1177
    %v1202 = vpop.f32.mrf.mxu0
    %v1203 = vadd.f32 %v134, %v1202
    %1204 = vmatmul.f32.gmra.mxu0 %v1179
    %v1205 = vpop.f32.mrf.mxu0
    %v1206 = vadd.f32 %v135, %v1205
    %1207 = vdwg.mxu0
    %v1208 = vmul.f32 %v1203, 1.442695
    %v1209 = vpow.pop %v1208
    %v1210 = vmul.f32 %v1206, 1.442695
    %v1211 = vpow.pop %v1210
    %v1212 = vsel %vm311, %v1209, 0.0
    %1213 = vadd.xlane.f32.xlu0 %v1212
    %v1214 = vpop.xlane.xlu0 %1213
    %v1215 = vsel %vm311, %v1211, 0.0
    %1216 = vadd.xlane.f32.xlu0 %v1215
    %v1217 = vpop.xlane.xlu0 %1216
    %v1218 = vrcp.pop %v1214
    %v1219 = vrcp.pop %v1217
    %v1220 = vmul.f32 %v1209, %v1218
    %v1221 = vmul.f32 %v1211, %v1219
    %1222 = vrot.lane.b32.xlu0 %v990, 48
    %v1223 = vpop.permute.xlu0 %1222
    %1224 = vrot.lane.b32.xlu0 %v993, 48
    %v1225 = vpop.permute.xlu0 %1224
    %v1229 = vsel %vm311, %v1220, 0
    %v1232 = vsel %vm311, %v1221, 0
    %1234 = vmatpush.msra.mxu0 0.0
    %1235 = vmatpush.msra.mxu0 0.0
    %1236 = vmatpush.msra.mxu0 0.0
    %1237 = vmatpush.msra.mxu0 0.0
    %1238 = vmatpush.msra.mxu0 0.0
    %1239 = vmatpush.msra.mxu0 0.0
    %1240 = vmatpush.msra.mxu0 0.0
    %1241 = vmatpush.msra.mxu0 0.0
    %1242 = vmatpush.msra.mxu0 0.0
    %1243 = vmatpush.msra.mxu0 0.0
    %1244 = vmatpush.msra.mxu0 0.0
    %1245 = vmatpush.msra.mxu0 0.0
    %1246 = vmatpush.msra.mxu0 0.0
    %1247 = vmatpush.msra.mxu0 0.0
    %1248 = vmatpush.msra.mxu0 %v1225
    %1249 = vmatpush.msra.mxu0 %v1223
    %1250 = vmatmul.f32.gmra.mxu0 %v1229
    %v1251 = vpop.f32.mrf.mxu0
    %v1252 = vadd.f32 0.0, %v1251
    %1253 = vmatmul.f32.gmra.mxu0 %v1232
    %v1254 = vpop.f32.mrf.mxu0
    %v1255 = vadd.f32 0.0, %v1254
    %1256 = vdwg.mxu0
    %1257 = vrot.lane.b32.xlu0 %v990, 104
    %v1258 = vpop.permute.xlu0 %1257
    %1259 = vrot.lane.b32.xlu0 %v993, 104
    %v1260 = vpop.permute.xlu0 %1259
    %1261 = vrot.lane.b32.xlu0 %v990, 72
    %v1262 = vpop.permute.xlu0 %1261
    %1263 = vrot.lane.b32.xlu0 %v993, 72
    %v1264 = vpop.permute.xlu0 %1263
    %v1265 = vsel %vm275, %v1258, 0
    %v1267 = vsel %vm275, %v1260, 0
    %v1269 = vsel %vm275, %v1262, 0
    %v1271 = vsel %vm275, %v1264, 0
    %1273 = vmatpush.xpose.msra.mxu0 0.0
    %1274 = vmatpush.xpose.msra.mxu0 0.0
    %1275 = vmatpush.xpose.msra.mxu0 0.0
    %1276 = vmatpush.xpose.msra.mxu0 0.0
    %1277 = vmatpush.xpose.msra.mxu0 0.0
    %1278 = vmatpush.xpose.msra.mxu0 0.0
    %1279 = vmatpush.xpose.msra.mxu0 0.0
    %1280 = vmatpush.xpose.msra.mxu0 0.0
    %1281 = vmatpush.xpose.msra.mxu0 0.0
    %1282 = vmatpush.xpose.msra.mxu0 0.0
    %1283 = vmatpush.xpose.msra.mxu0 0.0
    %1284 = vmatpush.xpose.msra.mxu0 0.0
    %1285 = vmatpush.xpose.msra.mxu0 0.0
    %1286 = vmatpush.xpose.msra.mxu0 0.0
    %1287 = vmatpush.xpose.msra.mxu0 %v1271
    %1288 = vmatpush.xpose.msra.mxu0 %v1269
    %1289 = vmatmul.f32.gmra.mxu0 %v1265
    %v1290 = vpop.f32.mrf.mxu0
    %v1291 = vadd.f32 %v134, %v1290
    %1292 = vmatmul.f32.gmra.mxu0 %v1267
    %v1293 = vpop.f32.mrf.mxu0
    %v1294 = vadd.f32 %v135, %v1293
    %1295 = vdwg.mxu0
    %v1296 = vmul.f32 %v1291, 1.442695
    %v1297 = vpow.pop %v1296
    %v1298 = vmul.f32 %v1294, 1.442695
    %v1299 = vpow.pop %v1298
    %v1300 = vsel %vm311, %v1297, 0.0
    %1301 = vadd.xlane.f32.xlu0 %v1300
    %v1302 = vpop.xlane.xlu0 %1301
    %v1303 = vsel %vm311, %v1299, 0.0
    %1304 = vadd.xlane.f32.xlu0 %v1303
    %v1305 = vpop.xlane.xlu0 %1304
    %v1306 = vrcp.pop %v1302
    %v1307 = vrcp.pop %v1305
    %v1308 = vmul.f32 %v1297, %v1306
    %v1309 = vmul.f32 %v1299, %v1307
    %1310 = vrot.lane.b32.xlu0 %v990, 40
    %v1311 = vpop.permute.xlu0 %1310
    %1312 = vrot.lane.b32.xlu0 %v993, 40
    %v1313 = vpop.permute.xlu0 %1312
    %v1317 = vsel %vm311, %v1308, 0
    %v1320 = vsel %vm311, %v1309, 0
    %1322 = vmatpush.msra.mxu0 0.0
    %1323 = vmatpush.msra.mxu0 0.0
    %1324 = vmatpush.msra.mxu0 0.0
    %1325 = vmatpush.msra.mxu0 0.0
    %1326 = vmatpush.msra.mxu0 0.0
    %1327 = vmatpush.msra.mxu0 0.0
    %1328 = vmatpush.msra.mxu0 0.0
    %1329 = vmatpush.msra.mxu0 0.0
    %1330 = vmatpush.msra.mxu0 0.0
    %1331 = vmatpush.msra.mxu0 0.0
    %1332 = vmatpush.msra.mxu0 0.0
    %1333 = vmatpush.msra.mxu0 0.0
    %1334 = vmatpush.msra.mxu0 0.0
    %1335 = vmatpush.msra.mxu0 0.0
    %1336 = vmatpush.msra.mxu0 %v1313
    %1337 = vmatpush.msra.mxu0 %v1311
    %1338 = vmatmul.f32.gmra.mxu0 %v1317
    %v1339 = vpop.f32.mrf.mxu0
    %v1340 = vadd.f32 0.0, %v1339
    %1341 = vmatmul.f32.gmra.mxu0 %v1320
    %v1342 = vpop.f32.mrf.mxu0
    %v1343 = vadd.f32 0.0, %v1342
    %1344 = vdwg.mxu0
    %1347 = vrot.lane.b32.xlu0 %v1164, 8
    %v1348 = vpop.permute.xlu0 %1347
    %1349 = vrot.lane.b32.xlu0 %v1167, 8
    %v1350 = vpop.permute.xlu0 %1349
    %1355 = vrot.lane.b32.xlu0 %v1252, 16
    %v1356 = vpop.permute.xlu0 %1355
    %1357 = vrot.lane.b32.xlu0 %v1255, 16
    %v1358 = vpop.permute.xlu0 %1357
    %1363 = vrot.lane.b32.xlu0 %v1340, 24
    %v1364 = vpop.permute.xlu0 %1363
    %1365 = vrot.lane.b32.xlu0 %v1343, 24
    %v1366 = vpop.permute.xlu0 %1365
    %v1369 = vsel %vm275, %v1076, %v1348
    %v1370 = vsel %vm275, %v1079, %v1350
    %v1371 = vsel %vm311, %v1369, %v1356
    %v1372 = vsel %vm311, %v1370, %v1358
    %v1373 = vsel %vm649, %v1371, %v1364
    %v1374 = vsel %vm649, %v1372, %v1366
    %s1375 = scalar_lea.vmem %s4, 32
    %v1376 = vld [vmem:[%s1375] sm:$0xff]
    %v1377 = vld [vmem:[%s1375 + $0x8] sm:$0xff]
    %v1378 = vld [vmem:[%s1375 + $0x10] sm:$0xff]
    %v1379 = vld [vmem:[%s1375 + $0x18] sm:$0xff]
    %v1381 = vsel %vm138, %v1373, 0
    %v1384 = vsel %vm138, %v1374, 0
    %1386 = vmatpush.msra.mxu0 0.0
    %1387 = vmatpush.msra.mxu0 0.0
    %1388 = vmatpush.msra.mxu0 0.0
    %1389 = vmatpush.msra.mxu0 0.0
    %1390 = vmatpush.msra.mxu0 0.0
    %1391 = vmatpush.msra.mxu0 0.0
    %1392 = vmatpush.msra.mxu0 0.0
    %1393 = vmatpush.msra.mxu0 0.0
    %1394 = vmatpush.msra.mxu0 0.0
    %1395 = vmatpush.msra.mxu0 0.0
    %1396 = vmatpush.msra.mxu0 0.0
    %1397 = vmatpush.msra.mxu0 0.0
    %1398 = vmatpush.msra.mxu0 %v1379
    %1399 = vmatpush.msra.mxu0 %v1378
    %1400 = vmatpush.msra.mxu0 %v1377
    %1401 = vmatpush.msra.mxu0 %v1376
    %1402 = vmatmul.f32.gmra.mxu0 %v1381
    %v1403 = vpop.f32.mrf.mxu0
    %v1404 = vadd.f32 0.0, %v1403
    %1405 = vmatmul.f32.gmra.mxu0 %v1384
    %v1406 = vpop.f32.mrf.mxu0
    %v1407 = vadd.f32 0.0, %v1406
    %1408 = vdwg.mxu0
    %v1409 = vadd.f32 %v864, %v1404
    %v1410 = vadd.f32 %v865, %v1407
    %s1411 = scalar_lea.vmem [#allocation7], 1
    %v1412 = vld [vmem:[%s1411] sm:$0x1]
    %v1414 = vperm.slane %v1412, 0
    %v1416 = vadd.f32 %v1409, %v1414
    %v1417 = vadd.f32 %v1410, %v1414
    %s1418 = scalar_lea.vmem %s12, 1
    %v1419 = vld [vmem:[%s1418] sm:$0x1]
    %s1420 = scalar_lea.vmem [#allocation10], 1
    %v1421 = vld [vmem:[%s1420] sm:$0x1]
    %v1422 = vsel %vm138, %v1416, 0.0
    %1423 = vadd.xlane.f32.xlu0 %v1422
    %v1424 = vpop.xlane.xlu0 %1423
    %v1425 = vsel %vm138, %v1417, 0.0
    %1426 = vadd.xlane.f32.xlu0 %v1425
    %v1427 = vpop.xlane.xlu0 %1426
    %v1428 = vmul.f32 %v1424, %v151
    %v1429 = vmul.f32 %v1427, %v151
    %v1430 = vsub.f32 %v1416, %v1428
    %v1431 = vsub.f32 %v1417, %v1429
    %v1432 = vmul.f32 %v1430, %v1430
    %v1433 = vmul.f32 %v1431, %v1431
    %v1434 = vsel %vm138, %v1432, 0.0
    %1435 = vadd.xlane.f32.xlu0 %v1434
    %v1436 = vpop.xlane.xlu0 %1435
    %v1437 = vsel %vm138, %v1433, 0.0
    %1438 = vadd.xlane.f32.xlu0 %v1437
    %v1439 = vpop.xlane.xlu0 %1438
    %v1440 = vmul.f32 %v1436, 0.032258064
    %v1441 = vmul.f32 %v1439, 0.032258064
    %v1442 = vrsqrt.pop %v1440
    %v1443 = vmul.f32 %v1442, %v1440
    %v1444 = vmul.f32 %v1443, %v1442
    %v1445 = vmul.f32 0.5, %v1444
    %v1446 = vsub.f32 1.5, %v1445
    %v1447 = vmul.f32 %v1442, %v1446
    %v1448 = vmul.f32 %v1440, %v1447
    %vm1449 = vcmp.eq.f32.partialorder %v1440, inf
    %v1450 = vsel %vm1449, %v1440, %v1448
    %vm1451 = vcmp.eq.f32.partialorder %v1440, 0.0
    %v1452 = vand.u32 %v1440, 2147483648
    %v1453 = vsel %vm1451, %v1452, %v1450
    %v1454 = vrsqrt.pop %v1441
    %v1455 = vmul.f32 %v1454, %v1441
    %v1456 = vmul.f32 %v1455, %v1454
    %v1457 = vmul.f32 0.5, %v1456
    %v1458 = vsub.f32 1.5, %v1457
    %v1459 = vmul.f32 %v1454, %v1458
    %v1460 = vmul.f32 %v1441, %v1459
    %vm1461 = vcmp.eq.f32.partialorder %v1441, inf
    %v1462 = vsel %vm1461, %v1441, %v1460
    %vm1463 = vcmp.eq.f32.partialorder %v1441, 0.0
    %v1464 = vand.u32 %v1441, 2147483648
    %v1465 = vsel %vm1463, %v1464, %v1462
    %v1466 = vadd.f32 %v1453, 1e-06
    %v1467 = vadd.f32 %v1465, 1e-06
    %v1468 = vrcp.pop %v1466
    %v1469 = vmul.f32 %v1466, %v1468
    %v1470 = vsub.f32 1.0, %v1469
    %v1471 = vmul.f32 %v1468, %v1470
    %v1472 = vadd.f32 %v1468, %v1471
    %vm1473 = vweird.f32 %v1466
    %vm1474 = vweird.f32 %v1468
    %vm1475 = vmor %vm1473, %vm1474
    %v1476 = vsel %vm1475, %v1468, %v1472
    %v1477 = vand.u32 2147483647, %v1466
    %vm1478 = vcmp.eq.f32.partialorder %v1477, 8.507059e+37
    %v1479 = vand.u32 %v1466, 2147483648
    %v1480 = vor.u32 1.1754944e-38, %v1479
    %v1481 = vsel %vm1478, %v1480, %v1476
    %v1482 = vrcp.pop %v1467
    %v1483 = vmul.f32 %v1467, %v1482
    %v1484 = vsub.f32 1.0, %v1483
    %v1485 = vmul.f32 %v1482, %v1484
    %v1486 = vadd.f32 %v1482, %v1485
    %vm1487 = vweird.f32 %v1467
    %vm1488 = vweird.f32 %v1482
    %vm1489 = vmor %vm1487, %vm1488
    %v1490 = vsel %vm1489, %v1482, %v1486
    %v1491 = vand.u32 2147483647, %v1467
    %vm1492 = vcmp.eq.f32.partialorder %v1491, 8.507059e+37
    %v1493 = vand.u32 %v1467, 2147483648
    %v1494 = vor.u32 1.1754944e-38, %v1493
    %v1495 = vsel %vm1492, %v1494, %v1490
    %v1497 = vperm.slane %v1419, 0
    %v1499 = vmul.f32 %v1497, %v1430
    %v1500 = vmul.f32 %v1497, %v1431
    %v1501 = vmul.f32 %v1499, %v1481
    %v1502 = vmul.f32 %v1500, %v1495
    %v1504 = vperm.slane %v1421, 0
    %v1506 = vadd.f32 %v1501, %v1504
    %v1507 = vadd.f32 %v1502, %v1504
    %s1508 = scalar_lea.vmem %s8, 32
    %v1509 = vld [vmem:[%s1508] sm:$0xff]
    %v1510 = vld [vmem:[%s1508 + $0x8] sm:$0xff]
    %v1511 = vld [vmem:[%s1508 + $0x10] sm:$0xff]
    %v1512 = vld [vmem:[%s1508 + $0x18] sm:$0xff]
    %s1513 = scalar_lea.vmem %s9, 1
    %v1514 = vld [vmem:[%s1513] sm:$0x1]
    %v1516 = vperm.slane %v1514, 0
    %v1519 = vsel %vm138, %v1506, 0
    %v1522 = vsel %vm138, %v1507, 0
    %1524 = vmatpush.msra.mxu0 0.0
    %1525 = vmatpush.msra.mxu0 0.0
    %1526 = vmatpush.msra.mxu0 0.0
    %1527 = vmatpush.msra.mxu0 0.0
    %1528 = vmatpush.msra.mxu0 0.0
    %1529 = vmatpush.msra.mxu0 0.0
    %1530 = vmatpush.msra.mxu0 0.0
    %1531 = vmatpush.msra.mxu0 0.0
    %1532 = vmatpush.msra.mxu0 0.0
    %1533 = vmatpush.msra.mxu0 0.0
    %1534 = vmatpush.msra.mxu0 0.0
    %1535 = vmatpush.msra.mxu0 0.0
    %1536 = vmatpush.msra.mxu0 %v1512
    %1537 = vmatpush.msra.mxu0 %v1511
    %1538 = vmatpush.msra.mxu0 %v1510
    %1539 = vmatpush.msra.mxu0 %v1509
    %1540 = vmatmul.f32.gmra.mxu0 %v1519
    %v1541 = vpop.f32.mrf.mxu0
    %v1542 = vadd.f32 %v1516, %v1541
    %1543 = vmatmul.f32.gmra.mxu0 %v1522
    %v1544 = vpop.f32.mrf.mxu0
    %v1545 = vadd.f32 %v1516, %v1544
    %1546 = vdwg.mxu0
    %v1547 = vmax.f32 %v1542, 0.0
    %v1548 = vmax.f32 %v1545, 0.0
    %s1549 = scalar_lea.vmem %s10, 64
    %v1550 = vld [vmem:[%s1549] sm:$0xff]
    %v1551 = vld [vmem:[%s1549 + $0x8] sm:$0xff]
    %v1552 = vld [vmem:[%s1549 + $0x10] sm:$0xff]
    %v1553 = vld [vmem:[%s1549 + $0x18] sm:$0xff]
    %v1554 = vld [vmem:[%s1549 + $0x20] sm:$0xff]
    %v1555 = vld [vmem:[%s1549 + $0x28] sm:$0xff]
    %v1556 = vld [vmem:[%s1549 + $0x30] sm:$0xff]
    %v1557 = vld [vmem:[%s1549 + $0x38] sm:$0xff]
    %v1559 = vsel %vm828, %v1547, 0
    %v1562 = vsel %vm828, %v1548, 0
    %1564 = vmatpush.msra.mxu0 0.0
    %1565 = vmatpush.msra.mxu0 0.0
    %1566 = vmatpush.msra.mxu0 0.0
    %1567 = vmatpush.msra.mxu0 0.0
    %1568 = vmatpush.msra.mxu0 0.0
    %1569 = vmatpush.msra.mxu0 0.0
    %1570 = vmatpush.msra.mxu0 0.0
    %1571 = vmatpush.msra.mxu0 0.0
    %1572 = vmatpush.msra.mxu0 %v1557
    %1573 = vmatpush.msra.mxu0 %v1556
    %1574 = vmatpush.msra.mxu0 %v1555
    %1575 = vmatpush.msra.mxu0 %v1554
    %1576 = vmatpush.msra.mxu0 %v1553
    %1577 = vmatpush.msra.mxu0 %v1552
    %1578 = vmatpush.msra.mxu0 %v1551
    %1579 = vmatpush.msra.mxu0 %v1550
    %1580 = vmatmul.f32.gmra.mxu0 %v1559
    %v1581 = vpop.f32.mrf.mxu0
    %v1582 = vadd.f32 0.0, %v1581
    %1583 = vmatmul.f32.gmra.mxu0 %v1562
    %v1584 = vpop.f32.mrf.mxu0
    %v1585 = vadd.f32 0.0, %v1584
    %1586 = vdwg.mxu0
    %v1587 = vadd.f32 %v1416, %v1582
    %v1588 = vadd.f32 %v1417, %v1585
    %s1589 = scalar_lea.vmem %s11, 1
    %v1590 = vld [vmem:[%s1589] sm:$0x1]
    %v1592 = vperm.slane %v1590, 0
    %v1594 = vadd.f32 %v1587, %v1592
    %v1595 = vadd.f32 %v1588, %v1592
    %v1596 = vld [vmem:[%s14] sm:$0x1]
    %v1597 = vld [vmem:[%s15] sm:$0x1]
    %v1598 = vsel %vm138, %v1594, 0.0
    %1599 = vadd.xlane.f32.xlu0 %v1598
    %v1600 = vpop.xlane.xlu0 %1599
    %v1601 = vsel %vm138, %v1595, 0.0
    %1602 = vadd.xlane.f32.xlu0 %v1601
    %v1603 = vpop.xlane.xlu0 %1602
    %v1604 = vmul.f32 %v1600, %v151
    %v1605 = vmul.f32 %v1603, %v151
    %v1606 = vsub.f32 %v1594, %v1604
    %v1607 = vsub.f32 %v1595, %v1605
    %v1608 = vmul.f32 %v1606, %v1606
    %v1609 = vmul.f32 %v1607, %v1607
    %v1610 = vsel %vm138, %v1608, 0.0
    %1611 = vadd.xlane.f32.xlu0 %v1610
    %v1612 = vpop.xlane.xlu0 %1611
    %v1613 = vsel %vm138, %v1609, 0.0
    %1614 = vadd.xlane.f32.xlu0 %v1613
    %v1615 = vpop.xlane.xlu0 %1614
    %v1616 = vmul.f32 %v1612, 0.032258064
    %v1617 = vmul.f32 %v1615, 0.032258064
    %v1618 = vrsqrt.pop %v1616
    %v1619 = vmul.f32 %v1618, %v1616
    %v1620 = vmul.f32 %v1619, %v1618
    %v1621 = vmul.f32 0.5, %v1620
    %v1622 = vsub.f32 1.5, %v1621
    %v1623 = vmul.f32 %v1618, %v1622
    %v1624 = vmul.f32 %v1616, %v1623
    %vm1625 = vcmp.eq.f32.partialorder %v1616, inf
    %v1626 = vsel %vm1625, %v1616, %v1624
    %vm1627 = vcmp.eq.f32.partialorder %v1616, 0.0
    %v1628 = vand.u32 %v1616, 2147483648
    %v1629 = vsel %vm1627, %v1628, %v1626
    %v1630 = vrsqrt.pop %v1617
    %v1631 = vmul.f32 %v1630, %v1617
    %v1632 = vmul.f32 %v1631, %v1630
    %v1633 = vmul.f32 0.5, %v1632
    %v1634 = vsub.f32 1.5, %v1633
    %v1635 = vmul.f32 %v1630, %v1634
    %v1636 = vmul.f32 %v1617, %v1635
    %vm1637 = vcmp.eq.f32.partialorder %v1617, inf
    %v1638 = vsel %vm1637, %v1617, %v1636
    %vm1639 = vcmp.eq.f32.partialorder %v1617, 0.0
    %v1640 = vand.u32 %v1617, 2147483648
    %v1641 = vsel %vm1639, %v1640, %v1638
    %v1642 = vadd.f32 %v1629, 1e-06
    %v1643 = vadd.f32 %v1641, 1e-06
    %v1644 = vrcp.pop %v1642
    %v1645 = vmul.f32 %v1642, %v1644
    %v1646 = vsub.f32 1.0, %v1645
    %v1647 = vmul.f32 %v1644, %v1646
    %v1648 = vadd.f32 %v1644, %v1647
    %vm1649 = vweird.f32 %v1642
    %vm1650 = vweird.f32 %v1644
    %vm1651 = vmor %vm1649, %vm1650
    %v1652 = vsel %vm1651, %v1644, %v1648
    %v1653 = vand.u32 2147483647, %v1642
    %vm1654 = vcmp.eq.f32.partialorder %v1653, 8.507059e+37
    %v1655 = vand.u32 %v1642, 2147483648
    %v1656 = vor.u32 1.1754944e-38, %v1655
    %v1657 = vsel %vm1654, %v1656, %v1652
    %v1658 = vrcp.pop %v1643
    %v1659 = vmul.f32 %v1643, %v1658
    %v1660 = vsub.f32 1.0, %v1659
    %v1661 = vmul.f32 %v1658, %v1660
    %v1662 = vadd.f32 %v1658, %v1661
    %vm1663 = vweird.f32 %v1643
    %vm1664 = vweird.f32 %v1658
    %vm1665 = vmor %vm1663, %vm1664
    %v1666 = vsel %vm1665, %v1658, %v1662
    %v1667 = vand.u32 2147483647, %v1643
    %vm1668 = vcmp.eq.f32.partialorder %v1667, 8.507059e+37
    %v1669 = vand.u32 %v1643, 2147483648
    %v1670 = vor.u32 1.1754944e-38, %v1669
    %v1671 = vsel %vm1668, %v1670, %v1666
    %v1673 = vperm.slane %v1596, 0
    %v1675 = vmul.f32 %v1673, %v1606
    %v1676 = vmul.f32 %v1673, %v1607
    %v1677 = vmul.f32 %v1675, %v1657
    %v1678 = vmul.f32 %v1676, %v1671
    %v1680 = vperm.slane %v1597, 0
    %v1682 = vadd.f32 %v1677, %v1680
    %v1683 = vadd.f32 %v1678, %v1680
    %1684 = vst.msk [vmem:[#allocation11] sm:$0xff] %vm138, %v1682
    %1685 = vst.msk [vmem:[#allocation11 + $0x8] sm:$0xff] %vm138, %v1683
    // Predicated region
    $region86: #{tpu_custom_call.1} parent=1 // pred_check
      _
    $region87: #{tpu_custom_call.1} parent=1 // pred_check_branch
      %1687 = sbr.rel (0) target = $region89
    $region88: #{tpu_custom_call.1} parent=1 // pred_region
      %1689 = vsyncadd [#allocation4], 0
      %s1690 = sshll.u32 [#allocation11], 4
      %s1691 = int_to_ptr.vmem [resolvable:$true] %s1690
      %s1692 = sshll.u32 %s16, 4
      %s1693 = int_to_ptr.hbm [resolvable:$true] %s1692
      %1698 = dma.vmem_to_hbm [thread:$0]  %s1691, 256, %s1693, [#allocation4], 128, 128, 8
    $region89: #{tpu_custom_call.1} parent=1 // pred_fallthru
      _
    // Predicated region
    $region90: #{tpu_custom_call.1} parent=1 // pred_check
      _
    $region91: #{tpu_custom_call.1} parent=1 // pred_check_branch
      %1700 = sbr.rel (0) target = $region93
    $region92: #{tpu_custom_call.1} parent=1 // pred_region
      %1702 = dma.done [#allocation4], 256
    $region93: #{tpu_custom_call.1} parent=1 // pred_fallthru
      _
    %1703 = vsyncpa [#allocation3], 1
    %1704 = vsyncpa [#allocation6], 1
    %1705 = vsyncpa [#allocation9], 1
    %1706 = vsyncpa [#allocation4], 1

</llo_original>
